<compile_context>
chip_gen: v5e
topology: v5e:2x2
jax: 0.10.0
libtpu: 0.0.40
codegen_flags: <defaults>
</compile_context>

<pallas_src>
import functools
import math

import jax
import jax.numpy as jnp
from jax.experimental import pallas as pl
from jax.experimental.pallas import tpu as pltpu

USER_NUM = 24
ITEM_NUM = 40
N = USER_NUM + ITEM_NUM
EMB = 32
N_LAYERS = 2
TOPK = 8


def _vmem_spec():
    return pl.BlockSpec(memory_space=pltpu.MemorySpace.VMEM)


# ---------------- Single fused kernel -----------------------------------------
def encoder_kernel(adj_ref, ego0_ref, w_ref, b_ref, out_ref, *, n_layers, topk, emb):
    f32 = jnp.float32
    dn_t = (((1,), (1,)), ((), ()))          # contract last dims (A @ B.T on MXU)

    adj = adj_ref[...]                       # (N, N)
    ego = ego0_ref[...]                      # (N, D)

    # ---- GNN propagation + layer mean (accumulator seeded by first layer) ----
    ego = jnp.dot(adj, ego, preferred_element_type=f32)
    acc = ego
    for _ in range(n_layers - 1):            # static unroll
        ego = jnp.dot(adj, ego, preferred_element_type=f32)
        acc = acc + ego
    all_emb = acc * f32(1.0 / n_layers)

    # ---- similarity (symmetric); dim1 x dim1 contraction, no explicit transpose ----
    sim = jax.lax.dot_general(ego, ego, dimension_numbers=dn_t,
                              preferred_element_type=f32)             # (N, N)

    # ---- one lane-dense projection matmul: [q*scale | key | val | (ego@Wf, unused)] ----
    w = w_ref[...]                            # (D, 4D)  = (32, 128)
    b = b_ref[...]                            # (1, 4D)
    proj = jnp.dot(ego, w, preferred_element_type=f32) + b            # (N, 4D)
    q = proj[:, 0:emb]                        # already scaled by 1/sqrt(d)
    key_all = proj[:, emb:2 * emb]
    val_all = proj[:, 2 * emb:3 * emb]

    # all pairwise (already scaled) attention scores
    qk = jax.lax.dot_general(q, key_all, dimension_numbers=dn_t,
                             preferred_element_type=f32)              # (N, N)

    # ---- top-k selection mask via iterative masked argmax (lowest index on ties,
    #      matching jax.lax.top_k).  Only a boolean mask is accumulated. ----
    n = sim.shape[0]
    col_ids = jax.lax.broadcasted_iota(jnp.int32, sim.shape, 1)       # (N, N)
    sim_cur = sim
    sel_mask = jnp.zeros(sim.shape, jnp.bool_)
    for _ in range(topk):                     # static unroll, K = 8
        m = jnp.max(sim_cur, axis=-1, keepdims=True)                  # (N, 1)
        is_max = sim_cur >= m
        sel = jnp.min(jnp.where(is_max, col_ids, n), axis=-1, keepdims=True)
        hit = col_ids == sel                                          # (N, N) bool
        sel_mask = jnp.logical_or(sel_mask, hit)
        sim_cur = jnp.where(hit, f32(-1e30), sim_cur)

    # ---- ONE masked row-softmax over the selected columns + a single matmul ----
    masked = jnp.where(sel_mask, qk, f32(-1e30))
    mrow = jnp.max(masked, axis=-1, keepdims=True)
    e = jnp.exp(masked - mrow)                # unselected entries underflow to 0
    denom = jnp.sum(e, axis=-1, keepdims=True)
    attn = jnp.dot(e, val_all, preferred_element_type=f32) * pl.reciprocal(denom, approx=False)
    # TODO(synk): nn.Dropout(0.2) is identity at inference; training-mode dropout not implemented.
    att_out = attn + 0.1 * ego

    # ---- gated fusion: one matmul + one tanh on the row-concatenated operand ----
    wf = w[:, 3 * emb:4 * emb]                # (D, D) lane slice of the weight slab
    bf = b[:, 3 * emb:4 * emb]                # (1, D)
    both = jnp.concatenate([all_emb, att_out], axis=0)                # (2N, D)
    a = jnp.tanh(jnp.dot(both, wf, preferred_element_type=f32) + bf)
    a1 = a[:n]
    a2 = a[n:]

    def col_softmax(x):
        # torch.softmax(torch.stack([a1, a2]), dim=1): normalize over the NODE
        # axis independently per stacked slice and per feature column.
        mm = jnp.max(x, axis=0, keepdims=True)
        ee = jnp.exp(x - mm)
        return ee * pl.reciprocal(jnp.sum(ee, axis=0, keepdims=True), approx=False)

    fused = col_softmax(a1) * all_emb + col_softmax(a2) * att_out

    # ---- lane-dense (N, 4*D) = (64, 128) output slab ----
    out_ref[...] = jnp.concatenate([all_emb, att_out, fused, ego], axis=-1)


# ---------------- Full forward ------------------------------------------------
def fusion_attention_gnn_encoder(params, adj):
    ego0 = jnp.concatenate([params["user_emb"], params["item_emb"]], axis=0)
    n, d = ego0.shape
    scale = 1.0 / math.sqrt(d)

    # Host-side slab prep: fold 1/sqrt(d) into wq/bq, concat all weights/biases.
    w_slab = jnp.concatenate(
        [params["wq"] * scale, params["wk"], params["wv"], params["wf"]], axis=1)  # (D, 4D)
    b_slab = jnp.concatenate(
        [params["bq"] * scale, params["bk"], params["bv"], params["bf"]], axis=1)  # (1, 4D)

    flops = 2 * (N_LAYERS * n * n * d     # GNN propagation
                 + n * n * d              # sim
                 + n * d * (4 * d)        # combined projection
                 + 2 * n * n * d          # qk + attn @ val
                 + 2 * n * d * d)         # fusion gate
    transcendentals = n * n + 4 * n * d   # exp(qk), tanh, 2x col_softmax exps
    bytes_accessed = 4 * (n * n + n * d + d * 4 * d + 4 * d + n * 4 * d)

    slab = pl.pallas_call(
        functools.partial(encoder_kernel, n_layers=N_LAYERS, topk=TOPK, emb=d),
        out_shape=jax.ShapeDtypeStruct((n, 4 * d), jnp.float32),
        in_specs=[_vmem_spec()] * 4,
        out_specs=_vmem_spec(),
        cost_estimate=pl.CostEstimate(flops=flops,
                                      transcendentals=transcendentals,
                                      bytes_accessed=bytes_accessed),
    )(adj, ego0, w_slab, b_slab)

    # Slice rows first, then lane groups (all_emb | att | fused | ego).
    u = slab[:USER_NUM]
    i = slab[USER_NUM:]
    return (u[:, 0:d], i[:, 0:d],
            u[:, d:2 * d], i[:, d:2 * d],
            u[:, 2 * d:3 * d], i[:, 2 * d:3 * d])


# ---------------- Pure-JAX reference (mirrors the torch forward) --------------
def reference_forward(params, adj):
    ego = jnp.concatenate([params["user_emb"], params["item_emb"]], axis=0)
    layers = []
    for _ in range(N_LAYERS):
        ego = adj @ ego
        layers.append(ego)
    all_emb = jnp.mean(jnp.stack(layers, axis=1), axis=1)
    sim = ego @ ego.T
    idx = jax.lax.top_k(sim, TOPK)[1]
    samp = ego[idx]                                       # (N, K, D)
    q = ego @ params["wq"] + params["bq"]
    k = samp @ params["wk"] + params["bk"]
    v = samp @ params["wv"] + params["bv"]
    scores = jnp.einsum("nd,nkd->nk", q, k) / math.sqrt(EMB)
    p = jax.nn.softmax(scores, axis=-1)
    att = jnp.einsum("nk,nkd->nd", p, v) + 0.1 * ego
    a1 = jnp.tanh(all_emb @ params["wf"] + params["bf"])
    a2 = jnp.tanh(att @ params["wf"] + params["bf"])
    a4 = jax.nn.softmax(jnp.stack([a1, a2]), axis=1)
    fused = a4[0] * all_emb + a4[1] * att
    return (all_emb[:USER_NUM], all_emb[USER_NUM:],
            att[:USER_NUM], att[USER_NUM:],
            fused[:USER_NUM], fused[USER_NUM:])


def _xavier_uniform(key, shape):
    bound = math.sqrt(6.0 / (shape[0] + shape[1]))
    return jax.random.uniform(key, shape, jnp.float32, -bound, bound)


def _xavier_normal(key, shape):
    std = math.sqrt(2.0 / (shape[0] + shape[1]))
    return jax.random.normal(key, shape, jnp.float32) * std


if __name__ == "__main__":
    key = jax.random.PRNGKey(0)
    keys = jax.random.split(key, 12)

    # deterministic symmetric-normalized bipartite adjacency (dense, small)
    R = (jax.random.uniform(keys[0], (USER_NUM, ITEM_NUM)) < 0.2).astype(jnp.float32)
    A = jnp.zeros((N, N), jnp.float32)
    A = A.at[:USER_NUM, USER_NUM:].set(R).at[USER_NUM:, :USER_NUM].set(R.T)
    deg = A.sum(axis=1)
    d_inv = jnp.where(deg > 0, 1.0 / jnp.sqrt(jnp.maximum(deg, 1e-12)), 0.0)
    adj = d_inv[:, None] * A * d_inv[None, :]

    # deterministic parameters (weights stored as (in, out); biases as (1, out))
    params = {
        "user_emb": _xavier_uniform(keys[1], (USER_NUM, EMB)),
        "item_emb": _xavier_uniform(keys[2], (ITEM_NUM, EMB)),
        "wq": _xavier_normal(keys[3], (EMB, EMB)),
        "wk": _xavier_normal(keys[4], (EMB, EMB)),
        "wv": _xavier_normal(keys[5], (EMB, EMB)),
        "bq": 0.1 * jax.random.normal(keys[6], (1, EMB), jnp.float32),
        "bk": 0.1 * jax.random.normal(keys[7], (1, EMB), jnp.float32),
        "bv": 0.1 * jax.random.normal(keys[8], (1, EMB), jnp.float32),
        "wf": _xavier_uniform(keys[9], (EMB, EMB)),
        "bf": 0.1 * jax.random.normal(keys[10], (1, EMB), jnp.float32),
    }

    outs = jax.block_until_ready(fusion_attention_gnn_encoder(params, adj))
    refs = jax.block_until_ready(reference_forward(params, adj))

    for o, r in zip(outs, refs):
        assert o.shape == r.shape and o.dtype == r.dtype
        assert jnp.allclose(o, r, rtol=1e-4, atol=1e-4), "mismatch vs reference"

    print("KERNEL_OK")
</pallas_src>

<mosaic_0001>
module attributes {stable_mosaic.version = 11 : i64} {
  func.func @encoder_kernel(%arg0: memref<64x64xf32, #tpu.memory_space<vmem>>, %arg1: memref<64x32xf32, #tpu.memory_space<vmem>>, %arg2: memref<32x128xf32, #tpu.memory_space<vmem>>, %arg3: memref<1x128xf32, #tpu.memory_space<vmem>>, %arg4: memref<64x128xf32, #tpu.memory_space<vmem>>) attributes {dimension_semantics = [], scalar_prefetch = 0 : i64, scratch_operands = 0 : i64, tpu.core_type = #tpu.core_type<tc>} {
    %c0 = arith.constant 0 : index
    %c0_0 = arith.constant 0 : index
    %0 = vector.load %arg0[%c0, %c0_0] : memref<64x64xf32, #tpu.memory_space<vmem>>, vector<64x64xf32>
    %c0_1 = arith.constant 0 : index
    %c0_2 = arith.constant 0 : index
    %1 = vector.load %arg1[%c0_1, %c0_2] : memref<64x32xf32, #tpu.memory_space<vmem>>, vector<64x32xf32>
    %cst = arith.constant dense<0.000000e+00> : vector<64x32xf32>
    %2 = tpu.matmul %0, %1, %cst {dimension_numbers = #tpu.dot_dimension_numbers<[1], [0], [0], [1], [0, 0, 1, 1], [], []>} : vector<64x64xf32>, vector<64x32xf32>, vector<64x32xf32> -> vector<64x32xf32>
    %cst_3 = arith.constant dense<0.000000e+00> : vector<64x32xf32>
    %3 = tpu.matmul %0, %2, %cst_3 {dimension_numbers = #tpu.dot_dimension_numbers<[1], [0], [0], [1], [0, 0, 1, 1], [], []>} : vector<64x64xf32>, vector<64x32xf32>, vector<64x32xf32> -> vector<64x32xf32>
    %4 = arith.addf %2, %3 : vector<64x32xf32>
    %cst_4 = arith.constant 5.000000e-01 : f32
    %5 = vector.broadcast %cst_4 : f32 to vector<64x32xf32>
    %6 = arith.mulf %4, %5 : vector<64x32xf32>
    %cst_5 = arith.constant dense<0.000000e+00> : vector<64x64xf32>
    %7 = tpu.matmul %3, %3, %cst_5 {dimension_numbers = #tpu.dot_dimension_numbers<[1], [1], [0], [0], [0, 0, 1, 0], [], []>} : vector<64x32xf32>, vector<64x32xf32>, vector<64x64xf32> -> vector<64x64xf32>
    %c0_6 = arith.constant 0 : index
    %c0_7 = arith.constant 0 : index
    %8 = vector.load %arg2[%c0_6, %c0_7] : memref<32x128xf32, #tpu.memory_space<vmem>>, vector<32x128xf32>
    %c0_8 = arith.constant 0 : index
    %c0_9 = arith.constant 0 : index
    %9 = vector.load %arg3[%c0_8, %c0_9] : memref<1x128xf32, #tpu.memory_space<vmem>>, vector<1x128xf32>
    %cst_10 = arith.constant dense<0.000000e+00> : vector<64x128xf32>
    %10 = tpu.matmul %3, %8, %cst_10 {dimension_numbers = #tpu.dot_dimension_numbers<[1], [0], [0], [1], [0, 0, 1, 1], [], []>} : vector<64x32xf32>, vector<32x128xf32>, vector<64x128xf32> -> vector<64x128xf32>
    %11 = vector.broadcast %9 : vector<1x128xf32> to vector<64x128xf32>
    %12 = arith.addf %10, %11 : vector<64x128xf32>
    %13 = vector.extract_strided_slice %12 {offsets = [0, 0], sizes = [64, 32], strides = [1, 1]} : vector<64x128xf32> to vector<64x32xf32>
    %14 = vector.extract_strided_slice %12 {offsets = [0, 32], sizes = [64, 32], strides = [1, 1]} : vector<64x128xf32> to vector<64x32xf32>
    %15 = vector.extract_strided_slice %12 {offsets = [0, 64], sizes = [64, 32], strides = [1, 1]} : vector<64x128xf32> to vector<64x32xf32>
    %cst_11 = arith.constant dense<0.000000e+00> : vector<64x64xf32>
    %16 = tpu.matmul %13, %14, %cst_11 {dimension_numbers = #tpu.dot_dimension_numbers<[1], [1], [0], [0], [0, 0, 1, 0], [], []>} : vector<64x32xf32>, vector<64x32xf32>, vector<64x64xf32> -> vector<64x64xf32>
    %17 = tpu.iota {dimensions = array<i32: 1>} : vector<64x64xi32>
    %false = arith.constant false
    %18 = vector.broadcast %false : i1 to vector<64x64xi1>
    %cst_12 = arith.constant dense<0xFF800000> : vector<64xf32>
    %19 = vector.multi_reduction <maximumf>, %7, %cst_12 [1] : vector<64x64xf32> to vector<64xf32>
    %20 = vector.shape_cast %19 : vector<64xf32> to vector<64x1xf32>
    %21 = vector.broadcast %20 : vector<64x1xf32> to vector<64x64xf32>
    %22 = arith.cmpf oge, %7, %21 : vector<64x64xf32>
    %c64_i32 = arith.constant 64 : i32
    %23 = vector.broadcast %c64_i32 : i32 to vector<64x64xi32>
    %24 = arith.select %22, %17, %23 : vector<64x64xi1>, vector<64x64xi32>
    %cst_13 = arith.constant dense<2147483647> : vector<64xi32>
    %25 = vector.multi_reduction <minsi>, %24, %cst_13 [1] : vector<64x64xi32> to vector<64xi32>
    %26 = vector.shape_cast %25 : vector<64xi32> to vector<64x1xi32>
    %27 = vector.broadcast %26 : vector<64x1xi32> to vector<64x64xi32>
    %28 = arith.cmpi eq, %17, %27 : vector<64x64xi32>
    %29 = arith.ori %18, %28 : vector<64x64xi1>
    %cst_14 = arith.constant -1.000000e+30 : f32
    %30 = vector.broadcast %cst_14 : f32 to vector<64x64xf32>
    %31 = arith.select %28, %30, %7 : vector<64x64xi1>, vector<64x64xf32>
    %cst_15 = arith.constant dense<0xFF800000> : vector<64xf32>
    %32 = vector.multi_reduction <maximumf>, %31, %cst_15 [1] : vector<64x64xf32> to vector<64xf32>
    %33 = vector.shape_cast %32 : vector<64xf32> to vector<64x1xf32>
    %34 = vector.broadcast %33 : vector<64x1xf32> to vector<64x64xf32>
    %35 = arith.cmpf oge, %31, %34 : vector<64x64xf32>
    %c64_i32_16 = arith.constant 64 : i32
    %36 = vector.broadcast %c64_i32_16 : i32 to vector<64x64xi32>
    %37 = arith.select %35, %17, %36 : vector<64x64xi1>, vector<64x64xi32>
    %cst_17 = arith.constant dense<2147483647> : vector<64xi32>
    %38 = vector.multi_reduction <minsi>, %37, %cst_17 [1] : vector<64x64xi32> to vector<64xi32>
    %39 = vector.shape_cast %38 : vector<64xi32> to vector<64x1xi32>
    %40 = vector.broadcast %39 : vector<64x1xi32> to vector<64x64xi32>
    %41 = arith.cmpi eq, %17, %40 : vector<64x64xi32>
    %42 = arith.ori %29, %41 : vector<64x64xi1>
    %cst_18 = arith.constant -1.000000e+30 : f32
    %43 = vector.broadcast %cst_18 : f32 to vector<64x64xf32>
    %44 = arith.select %41, %43, %31 : vector<64x64xi1>, vector<64x64xf32>
    %cst_19 = arith.constant dense<0xFF800000> : vector<64xf32>
    %45 = vector.multi_reduction <maximumf>, %44, %cst_19 [1] : vector<64x64xf32> to vector<64xf32>
    %46 = vector.shape_cast %45 : vector<64xf32> to vector<64x1xf32>
    %47 = vector.broadcast %46 : vector<64x1xf32> to vector<64x64xf32>
    %48 = arith.cmpf oge, %44, %47 : vector<64x64xf32>
    %c64_i32_20 = arith.constant 64 : i32
    %49 = vector.broadcast %c64_i32_20 : i32 to vector<64x64xi32>
    %50 = arith.select %48, %17, %49 : vector<64x64xi1>, vector<64x64xi32>
    %cst_21 = arith.constant dense<2147483647> : vector<64xi32>
    %51 = vector.multi_reduction <minsi>, %50, %cst_21 [1] : vector<64x64xi32> to vector<64xi32>
    %52 = vector.shape_cast %51 : vector<64xi32> to vector<64x1xi32>
    %53 = vector.broadcast %52 : vector<64x1xi32> to vector<64x64xi32>
    %54 = arith.cmpi eq, %17, %53 : vector<64x64xi32>
    %55 = arith.ori %42, %54 : vector<64x64xi1>
    %cst_22 = arith.constant -1.000000e+30 : f32
    %56 = vector.broadcast %cst_22 : f32 to vector<64x64xf32>
    %57 = arith.select %54, %56, %44 : vector<64x64xi1>, vector<64x64xf32>
    %cst_23 = arith.constant dense<0xFF800000> : vector<64xf32>
    %58 = vector.multi_reduction <maximumf>, %57, %cst_23 [1] : vector<64x64xf32> to vector<64xf32>
    %59 = vector.shape_cast %58 : vector<64xf32> to vector<64x1xf32>
    %60 = vector.broadcast %59 : vector<64x1xf32> to vector<64x64xf32>
    %61 = arith.cmpf oge, %57, %60 : vector<64x64xf32>
    %c64_i32_24 = arith.constant 64 : i32
    %62 = vector.broadcast %c64_i32_24 : i32 to vector<64x64xi32>
    %63 = arith.select %61, %17, %62 : vector<64x64xi1>, vector<64x64xi32>
    %cst_25 = arith.constant dense<2147483647> : vector<64xi32>
    %64 = vector.multi_reduction <minsi>, %63, %cst_25 [1] : vector<64x64xi32> to vector<64xi32>
    %65 = vector.shape_cast %64 : vector<64xi32> to vector<64x1xi32>
    %66 = vector.broadcast %65 : vector<64x1xi32> to vector<64x64xi32>
    %67 = arith.cmpi eq, %17, %66 : vector<64x64xi32>
    %68 = arith.ori %55, %67 : vector<64x64xi1>
    %cst_26 = arith.constant -1.000000e+30 : f32
    %69 = vector.broadcast %cst_26 : f32 to vector<64x64xf32>
    %70 = arith.select %67, %69, %57 : vector<64x64xi1>, vector<64x64xf32>
    %cst_27 = arith.constant dense<0xFF800000> : vector<64xf32>
    %71 = vector.multi_reduction <maximumf>, %70, %cst_27 [1] : vector<64x64xf32> to vector<64xf32>
    %72 = vector.shape_cast %71 : vector<64xf32> to vector<64x1xf32>
    %73 = vector.broadcast %72 : vector<64x1xf32> to vector<64x64xf32>
    %74 = arith.cmpf oge, %70, %73 : vector<64x64xf32>
    %c64_i32_28 = arith.constant 64 : i32
    %75 = vector.broadcast %c64_i32_28 : i32 to vector<64x64xi32>
    %76 = arith.select %74, %17, %75 : vector<64x64xi1>, vector<64x64xi32>
    %cst_29 = arith.constant dense<2147483647> : vector<64xi32>
    %77 = vector.multi_reduction <minsi>, %76, %cst_29 [1] : vector<64x64xi32> to vector<64xi32>
    %78 = vector.shape_cast %77 : vector<64xi32> to vector<64x1xi32>
    %79 = vector.broadcast %78 : vector<64x1xi32> to vector<64x64xi32>
    %80 = arith.cmpi eq, %17, %79 : vector<64x64xi32>
    %81 = arith.ori %68, %80 : vector<64x64xi1>
    %cst_30 = arith.constant -1.000000e+30 : f32
    %82 = vector.broadcast %cst_30 : f32 to vector<64x64xf32>
    %83 = arith.select %80, %82, %70 : vector<64x64xi1>, vector<64x64xf32>
    %cst_31 = arith.constant dense<0xFF800000> : vector<64xf32>
    %84 = vector.multi_reduction <maximumf>, %83, %cst_31 [1] : vector<64x64xf32> to vector<64xf32>
    %85 = vector.shape_cast %84 : vector<64xf32> to vector<64x1xf32>
    %86 = vector.broadcast %85 : vector<64x1xf32> to vector<64x64xf32>
    %87 = arith.cmpf oge, %83, %86 : vector<64x64xf32>
    %c64_i32_32 = arith.constant 64 : i32
    %88 = vector.broadcast %c64_i32_32 : i32 to vector<64x64xi32>
    %89 = arith.select %87, %17, %88 : vector<64x64xi1>, vector<64x64xi32>
    %cst_33 = arith.constant dense<2147483647> : vector<64xi32>
    %90 = vector.multi_reduction <minsi>, %89, %cst_33 [1] : vector<64x64xi32> to vector<64xi32>
    %91 = vector.shape_cast %90 : vector<64xi32> to vector<64x1xi32>
    %92 = vector.broadcast %91 : vector<64x1xi32> to vector<64x64xi32>
    %93 = arith.cmpi eq, %17, %92 : vector<64x64xi32>
    %94 = arith.ori %81, %93 : vector<64x64xi1>
    %cst_34 = arith.constant -1.000000e+30 : f32
    %95 = vector.broadcast %cst_34 : f32 to vector<64x64xf32>
    %96 = arith.select %93, %95, %83 : vector<64x64xi1>, vector<64x64xf32>
    %cst_35 = arith.constant dense<0xFF800000> : vector<64xf32>
    %97 = vector.multi_reduction <maximumf>, %96, %cst_35 [1] : vector<64x64xf32> to vector<64xf32>
    %98 = vector.shape_cast %97 : vector<64xf32> to vector<64x1xf32>
    %99 = vector.broadcast %98 : vector<64x1xf32> to vector<64x64xf32>
    %100 = arith.cmpf oge, %96, %99 : vector<64x64xf32>
    %c64_i32_36 = arith.constant 64 : i32
    %101 = vector.broadcast %c64_i32_36 : i32 to vector<64x64xi32>
    %102 = arith.select %100, %17, %101 : vector<64x64xi1>, vector<64x64xi32>
    %cst_37 = arith.constant dense<2147483647> : vector<64xi32>
    %103 = vector.multi_reduction <minsi>, %102, %cst_37 [1] : vector<64x64xi32> to vector<64xi32>
    %104 = vector.shape_cast %103 : vector<64xi32> to vector<64x1xi32>
    %105 = vector.broadcast %104 : vector<64x1xi32> to vector<64x64xi32>
    %106 = arith.cmpi eq, %17, %105 : vector<64x64xi32>
    %107 = arith.ori %94, %106 : vector<64x64xi1>
    %cst_38 = arith.constant -1.000000e+30 : f32
    %108 = vector.broadcast %cst_38 : f32 to vector<64x64xf32>
    %109 = arith.select %106, %108, %96 : vector<64x64xi1>, vector<64x64xf32>
    %cst_39 = arith.constant dense<0xFF800000> : vector<64xf32>
    %110 = vector.multi_reduction <maximumf>, %109, %cst_39 [1] : vector<64x64xf32> to vector<64xf32>
    %111 = vector.shape_cast %110 : vector<64xf32> to vector<64x1xf32>
    %112 = vector.broadcast %111 : vector<64x1xf32> to vector<64x64xf32>
    %113 = arith.cmpf oge, %109, %112 : vector<64x64xf32>
    %c64_i32_40 = arith.constant 64 : i32
    %114 = vector.broadcast %c64_i32_40 : i32 to vector<64x64xi32>
    %115 = arith.select %113, %17, %114 : vector<64x64xi1>, vector<64x64xi32>
    %cst_41 = arith.constant dense<2147483647> : vector<64xi32>
    %116 = vector.multi_reduction <minsi>, %115, %cst_41 [1] : vector<64x64xi32> to vector<64xi32>
    %117 = vector.shape_cast %116 : vector<64xi32> to vector<64x1xi32>
    %118 = vector.broadcast %117 : vector<64x1xi32> to vector<64x64xi32>
    %119 = arith.cmpi eq, %17, %118 : vector<64x64xi32>
    %120 = arith.ori %107, %119 : vector<64x64xi1>
    %cst_42 = arith.constant -1.000000e+30 : f32
    %121 = vector.broadcast %cst_42 : f32 to vector<64x64xf32>
    %122 = arith.select %120, %16, %121 : vector<64x64xi1>, vector<64x64xf32>
    %cst_43 = arith.constant dense<0xFF800000> : vector<64xf32>
    %123 = vector.multi_reduction <maximumf>, %122, %cst_43 [1] : vector<64x64xf32> to vector<64xf32>
    %124 = vector.shape_cast %123 : vector<64xf32> to vector<64x1xf32>
    %125 = vector.broadcast %124 : vector<64x1xf32> to vector<64x64xf32>
    %126 = arith.subf %122, %125 : vector<64x64xf32>
    %127 = math.exp %126 : vector<64x64xf32>
    %cst_44 = arith.constant dense<0.000000e+00> : vector<64xf32>
    %128 = vector.multi_reduction <add>, %127, %cst_44 [1] : vector<64x64xf32> to vector<64xf32>
    %129 = vector.shape_cast %128 : vector<64xf32> to vector<64x1xf32>
    %cst_45 = arith.constant dense<0.000000e+00> : vector<64x32xf32>
    %130 = tpu.matmul %127, %15, %cst_45 {dimension_numbers = #tpu.dot_dimension_numbers<[1], [0], [0], [1], [0, 0, 1, 1], [], []>} : vector<64x64xf32>, vector<64x32xf32>, vector<64x32xf32> -> vector<64x32xf32>
    %131 = tpu.reciprocal %129 : vector<64x1xf32> -> vector<64x1xf32>
    %132 = vector.broadcast %131 : vector<64x1xf32> to vector<64x32xf32>
    %133 = arith.mulf %130, %132 : vector<64x32xf32>
    %cst_46 = arith.constant 1.000000e-01 : f32
    %134 = vector.broadcast %cst_46 : f32 to vector<64x32xf32>
    %135 = arith.mulf %134, %3 : vector<64x32xf32>
    %136 = arith.addf %133, %135 : vector<64x32xf32>
    %137 = vector.extract_strided_slice %8 {offsets = [0, 96], sizes = [32, 32], strides = [1, 1]} : vector<32x128xf32> to vector<32x32xf32>
    %138 = vector.extract_strided_slice %9 {offsets = [0, 96], sizes = [1, 32], strides = [1, 1]} : vector<1x128xf32> to vector<1x32xf32>
    %139 = tpu.concatenate %6, %136 in 0 : vector<64x32xf32>, vector<64x32xf32> -> vector<128x32xf32>
    %cst_47 = arith.constant dense<0.000000e+00> : vector<128x32xf32>
    %140 = tpu.matmul %139, %137, %cst_47 {dimension_numbers = #tpu.dot_dimension_numbers<[1], [0], [0], [1], [0, 0, 1, 1], [], []>} : vector<128x32xf32>, vector<32x32xf32>, vector<128x32xf32> -> vector<128x32xf32>
    %141 = vector.broadcast %138 : vector<1x32xf32> to vector<128x32xf32>
    %142 = arith.addf %140, %141 : vector<128x32xf32>
    %143 = math.tanh %142 : vector<128x32xf32>
    %144 = vector.extract_strided_slice %143 {offsets = [0, 0], sizes = [64, 32], strides = [1, 1]} : vector<128x32xf32> to vector<64x32xf32>
    %145 = vector.extract_strided_slice %143 {offsets = [64, 0], sizes = [64, 32], strides = [1, 1]} : vector<128x32xf32> to vector<64x32xf32>
    %cst_48 = arith.constant dense<0xFF800000> : vector<32xf32>
    %146 = vector.multi_reduction <maximumf>, %144, %cst_48 [0] : vector<64x32xf32> to vector<32xf32>
    %147 = vector.shape_cast %146 : vector<32xf32> to vector<1x32xf32>
    %148 = vector.broadcast %147 : vector<1x32xf32> to vector<64x32xf32>
    %149 = arith.subf %144, %148 : vector<64x32xf32>
    %150 = math.exp %149 : vector<64x32xf32>
    %cst_49 = arith.constant dense<0.000000e+00> : vector<32xf32>
    %151 = vector.multi_reduction <add>, %150, %cst_49 [0] : vector<64x32xf32> to vector<32xf32>
    %152 = vector.shape_cast %151 : vector<32xf32> to vector<1x32xf32>
    %153 = tpu.reciprocal %152 : vector<1x32xf32> -> vector<1x32xf32>
    %154 = vector.broadcast %153 : vector<1x32xf32> to vector<64x32xf32>
    %155 = arith.mulf %150, %154 : vector<64x32xf32>
    %156 = arith.mulf %155, %6 : vector<64x32xf32>
    %cst_50 = arith.constant dense<0xFF800000> : vector<32xf32>
    %157 = vector.multi_reduction <maximumf>, %145, %cst_50 [0] : vector<64x32xf32> to vector<32xf32>
    %158 = vector.shape_cast %157 : vector<32xf32> to vector<1x32xf32>
    %159 = vector.broadcast %158 : vector<1x32xf32> to vector<64x32xf32>
    %160 = arith.subf %145, %159 : vector<64x32xf32>
    %161 = math.exp %160 : vector<64x32xf32>
    %cst_51 = arith.constant dense<0.000000e+00> : vector<32xf32>
    %162 = vector.multi_reduction <add>, %161, %cst_51 [0] : vector<64x32xf32> to vector<32xf32>
    %163 = vector.shape_cast %162 : vector<32xf32> to vector<1x32xf32>
    %164 = tpu.reciprocal %163 : vector<1x32xf32> -> vector<1x32xf32>
    %165 = vector.broadcast %164 : vector<1x32xf32> to vector<64x32xf32>
    %166 = arith.mulf %161, %165 : vector<64x32xf32>
    %167 = arith.mulf %166, %136 : vector<64x32xf32>
    %168 = arith.addf %156, %167 : vector<64x32xf32>
    %169 = tpu.concatenate %6, %136, %168, %3 in 1 : vector<64x32xf32>, vector<64x32xf32>, vector<64x32xf32>, vector<64x32xf32> -> vector<64x128xf32>
    %c0_52 = arith.constant 0 : index
    %c0_53 = arith.constant 0 : index
    %170 = vector.load %arg4[%c0_52, %c0_53] : memref<64x128xf32, #tpu.memory_space<vmem>>, vector<64x128xf32>
    tpu.vector_store %arg4[%c0_52, %c0_53], %169 {strides = array<i32>} : memref<64x128xf32, #tpu.memory_space<vmem>>, vector<64x128xf32>,
    return
  }
}

</mosaic_0001>

<llo_original>
// kernel: tpu_custom_call.1
$region0: #{tpu_custom_call.1}
  #allocation0 [shape = 'u32[]', space=smem, size = 0x4, offset = 0x4, fixed_abs, tag = 'smem constant byte address 0x4 - core index']
  #allocation1 [shape = 'u32[72,128]{1,0:T(1,128)}', space=vmem, size = 0x9000, scoped, tag = 'internal scratch']
  %s0 = inlined_call_operand.vmem [shape: f32[64,64], index: 0, kind: input, shape index: {}]
  %s1 = inlined_call_operand.vmem [shape: f32[64,32], index: 1, kind: input, shape index: {}]
  %s2 = inlined_call_operand.vmem [shape: f32[32,128], index: 2, kind: input, shape index: {}]
  %s3 = inlined_call_operand.vmem [shape: f32[1,128], index: 3, kind: input, shape index: {}]
  %s4 = inlined_call_operand.hbm [shape: f32[64,128], index: 4, kind: output, shape index: {}]
  %s5 = sld [smem:[#allocation0]]
  $region26: #{tpu_custom_call.1} parent=0
    _
  %s7 = ssub.s32 1, %s5
  %s8 = scalar_select 0, %s7, %s5
  $region1: #{tpu_custom_call.1} parent=0
    #allocation2 [shape = 'u8[32768]{0}', space=vmem, size = 0x8000, scoped, tag = 'output window, operand 0, single buffered']
    #allocation3 [shape = 's32[1]{0}', space=sflag, size = 0x4, scoped, tag = 'scoped memory for tpu_custom_call.1']
    %9 = vsyncpa [#allocation3], 0
    // Predicated region
    $region2: #{tpu_custom_call.1} parent=1 // pred_check
      _
    $region3: #{tpu_custom_call.1} parent=1 // pred_check_branch
      %11 = sbr.rel (0) target = $region5
    $region4: #{tpu_custom_call.1} parent=1 // pred_region
      _
    $region5: #{tpu_custom_call.1} parent=1 // pred_fallthru
      _
    // Predicated region
    $region6: #{tpu_custom_call.1} parent=1 // pred_check
      _
    $region7: #{tpu_custom_call.1} parent=1 // pred_check_branch
      %13 = sbr.rel (0) target = $region9
    $region8: #{tpu_custom_call.1} parent=1 // pred_region
      _
    $region9: #{tpu_custom_call.1} parent=1 // pred_fallthru
      _
    // Predicated region
    $region10: #{tpu_custom_call.1} parent=1 // pred_check
      _
    $region11: #{tpu_custom_call.1} parent=1 // pred_check_branch
      %15 = sbr.rel (0) target = $region13
    $region12: #{tpu_custom_call.1} parent=1 // pred_region
      _
    $region13: #{tpu_custom_call.1} parent=1 // pred_fallthru
      _
    // Predicated region
    $region14: #{tpu_custom_call.1} parent=1 // pred_check
      _
    $region15: #{tpu_custom_call.1} parent=1 // pred_check_branch
      %17 = sbr.rel (0) target = $region17
    $region16: #{tpu_custom_call.1} parent=1 // pred_region
      _
    $region17: #{tpu_custom_call.1} parent=1 // pred_fallthru
      _
    %v18 = vld [vmem:[%s0] sm:$0xff]
    %v19 = vld [vmem:[%s0 + $0x8] sm:$0xff]
    %v20 = vld [vmem:[%s0 + $0x10] sm:$0xff]
    %v21 = vld [vmem:[%s0 + $0x18] sm:$0xff]
    %v22 = vld [vmem:[%s0 + $0x20] sm:$0xff]
    %v23 = vld [vmem:[%s0 + $0x28] sm:$0xff]
    %v24 = vld [vmem:[%s0 + $0x30] sm:$0xff]
    %v25 = vld [vmem:[%s0 + $0x38] sm:$0xff]
    %v26 = vld [vmem:[%s1] sm:$0xff]
    %v27 = vld [vmem:[%s1 + $0x8] sm:$0xff]
    %v28 = vld [vmem:[%s1 + $0x10] sm:$0xff]
    %v29 = vld [vmem:[%s1 + $0x18] sm:$0xff]
    %v30 = vld [vmem:[%s1 + $0x20] sm:$0xff]
    %v31 = vld [vmem:[%s1 + $0x28] sm:$0xff]
    %v32 = vld [vmem:[%s1 + $0x30] sm:$0xff]
    %v33 = vld [vmem:[%s1 + $0x38] sm:$0xff]
    %vm34 = vcmask 523264
    %v36 = vsel %vm34, %v18, 0
    %v39 = vsel %vm34, %v19, 0
    %v42 = vsel %vm34, %v20, 0
    %v45 = vsel %vm34, %v21, 0
    %v48 = vsel %vm34, %v22, 0
    %v51 = vsel %vm34, %v23, 0
    %v54 = vsel %vm34, %v24, 0
    %v57 = vsel %vm34, %v25, 0
    %59 = vmatpush.msra.mxu0 0.0
    %60 = vmatpush.msra.mxu0 0.0
    %61 = vmatpush.msra.mxu0 0.0
    %62 = vmatpush.msra.mxu0 0.0
    %63 = vmatpush.msra.mxu0 0.0
    %64 = vmatpush.msra.mxu0 0.0
    %65 = vmatpush.msra.mxu0 0.0
    %66 = vmatpush.msra.mxu0 0.0
    %67 = vmatpush.msra.mxu0 %v33
    %68 = vmatpush.msra.mxu0 %v32
    %69 = vmatpush.msra.mxu0 %v31
    %70 = vmatpush.msra.mxu0 %v30
    %71 = vmatpush.msra.mxu0 %v29
    %72 = vmatpush.msra.mxu0 %v28
    %73 = vmatpush.msra.mxu0 %v27
    %74 = vmatpush.msra.mxu0 %v26
    %75 = vmatmul.f32.gmra.mxu0 %v36
    %v76 = vpop.f32.mrf.mxu0
    %v77 = vadd.f32 0.0, %v76
    %78 = vmatmul.f32.gmra.mxu0 %v39
    %v79 = vpop.f32.mrf.mxu0
    %v80 = vadd.f32 0.0, %v79
    %81 = vmatmul.f32.gmra.mxu0 %v42
    %v82 = vpop.f32.mrf.mxu0
    %v83 = vadd.f32 0.0, %v82
    %84 = vmatmul.f32.gmra.mxu0 %v45
    %v85 = vpop.f32.mrf.mxu0
    %v86 = vadd.f32 0.0, %v85
    %87 = vmatmul.f32.gmra.mxu0 %v48
    %v88 = vpop.f32.mrf.mxu0
    %v89 = vadd.f32 0.0, %v88
    %90 = vmatmul.f32.gmra.mxu0 %v51
    %v91 = vpop.f32.mrf.mxu0
    %v92 = vadd.f32 0.0, %v91
    %93 = vmatmul.f32.gmra.mxu0 %v54
    %v94 = vpop.f32.mrf.mxu0
    %v95 = vadd.f32 0.0, %v94
    %96 = vmatmul.f32.gmra.mxu0 %v57
    %v97 = vpop.f32.mrf.mxu0
    %v98 = vadd.f32 0.0, %v97
    %99 = vdwg.mxu0
    %100 = vmatpush.msra.mxu0 0.0
    %101 = vmatpush.msra.mxu0 0.0
    %102 = vmatpush.msra.mxu0 0.0
    %103 = vmatpush.msra.mxu0 0.0
    %104 = vmatpush.msra.mxu0 0.0
    %105 = vmatpush.msra.mxu0 0.0
    %106 = vmatpush.msra.mxu0 0.0
    %107 = vmatpush.msra.mxu0 0.0
    %108 = vmatpush.msra.mxu0 %v98
    %109 = vmatpush.msra.mxu0 %v95
    %110 = vmatpush.msra.mxu0 %v92
    %111 = vmatpush.msra.mxu0 %v89
    %112 = vmatpush.msra.mxu0 %v86
    %113 = vmatpush.msra.mxu0 %v83
    %114 = vmatpush.msra.mxu0 %v80
    %115 = vmatpush.msra.mxu0 %v77
    %116 = vmatmul.f32.gmra.mxu0 %v36
    %v117 = vpop.f32.mrf.mxu0
    %v118 = vadd.f32 0.0, %v117
    %119 = vmatmul.f32.gmra.mxu0 %v39
    %v120 = vpop.f32.mrf.mxu0
    %v121 = vadd.f32 0.0, %v120
    %122 = vmatmul.f32.gmra.mxu0 %v42
    %v123 = vpop.f32.mrf.mxu0
    %v124 = vadd.f32 0.0, %v123
    %125 = vmatmul.f32.gmra.mxu0 %v45
    %v126 = vpop.f32.mrf.mxu0
    %v127 = vadd.f32 0.0, %v126
    %128 = vmatmul.f32.gmra.mxu0 %v48
    %v129 = vpop.f32.mrf.mxu0
    %v130 = vadd.f32 0.0, %v129
    %131 = vmatmul.f32.gmra.mxu0 %v51
    %v132 = vpop.f32.mrf.mxu0
    %v133 = vadd.f32 0.0, %v132
    %134 = vmatmul.f32.gmra.mxu0 %v54
    %v135 = vpop.f32.mrf.mxu0
    %v136 = vadd.f32 0.0, %v135
    %137 = vmatmul.f32.gmra.mxu0 %v57
    %v138 = vpop.f32.mrf.mxu0
    %v139 = vadd.f32 0.0, %v138
    %140 = vdwg.mxu0
    %v141 = vadd.f32 %v77, %v118
    %v142 = vadd.f32 %v80, %v121
    %v143 = vadd.f32 %v83, %v124
    %v144 = vadd.f32 %v86, %v127
    %v145 = vadd.f32 %v89, %v130
    %v146 = vadd.f32 %v92, %v133
    %v147 = vadd.f32 %v95, %v136
    %v148 = vadd.f32 %v98, %v139
    %v149 = vmul.f32 %v141, 0.5
    %v150 = vmul.f32 %v142, 0.5
    %v151 = vmul.f32 %v143, 0.5
    %v152 = vmul.f32 %v144, 0.5
    %v153 = vmul.f32 %v145, 0.5
    %v154 = vmul.f32 %v146, 0.5
    %v155 = vmul.f32 %v147, 0.5
    %v156 = vmul.f32 %v148, 0.5
    %vm157 = vcmask 261120
    %v159 = vsel %vm157, %v118, 0
    %v162 = vsel %vm157, %v121, 0
    %v165 = vsel %vm157, %v124, 0
    %v168 = vsel %vm157, %v127, 0
    %v171 = vsel %vm157, %v130, 0
    %v174 = vsel %vm157, %v133, 0
    %v177 = vsel %vm157, %v136, 0
    %v180 = vsel %vm157, %v139, 0
    %182 = vmatpush.xpose.msra.mxu0 0.0
    %183 = vmatpush.xpose.msra.mxu0 0.0
    %184 = vmatpush.xpose.msra.mxu0 0.0
    %185 = vmatpush.xpose.msra.mxu0 0.0
    %186 = vmatpush.xpose.msra.mxu0 0.0
    %187 = vmatpush.xpose.msra.mxu0 0.0
    %188 = vmatpush.xpose.msra.mxu0 0.0
    %189 = vmatpush.xpose.msra.mxu0 0.0
    %190 = vmatpush.xpose.msra.mxu0 %v180
    %191 = vmatpush.xpose.msra.mxu0 %v177
    %192 = vmatpush.xpose.msra.mxu0 %v174
    %193 = vmatpush.xpose.msra.mxu0 %v171
    %194 = vmatpush.xpose.msra.mxu0 %v168
    %195 = vmatpush.xpose.msra.mxu0 %v165
    %196 = vmatpush.xpose.msra.mxu0 %v162
    %197 = vmatpush.xpose.msra.mxu0 %v159
    %198 = vmatmul.f32.gmra.mxu0 %v159
    %v199 = vpop.f32.mrf.mxu0
    %v200 = vadd.f32 0.0, %v199
    %201 = vmatmul.f32.gmra.mxu0 %v162
    %v202 = vpop.f32.mrf.mxu0
    %v203 = vadd.f32 0.0, %v202
    %204 = vmatmul.f32.gmra.mxu0 %v165
    %v205 = vpop.f32.mrf.mxu0
    %v206 = vadd.f32 0.0, %v205
    %207 = vmatmul.f32.gmra.mxu0 %v168
    %v208 = vpop.f32.mrf.mxu0
    %v209 = vadd.f32 0.0, %v208
    %210 = vmatmul.f32.gmra.mxu0 %v171
    %v211 = vpop.f32.mrf.mxu0
    %v212 = vadd.f32 0.0, %v211
    %213 = vmatmul.f32.gmra.mxu0 %v174
    %v214 = vpop.f32.mrf.mxu0
    %v215 = vadd.f32 0.0, %v214
    %216 = vmatmul.f32.gmra.mxu0 %v177
    %v217 = vpop.f32.mrf.mxu0
    %v218 = vadd.f32 0.0, %v217
    %219 = vmatmul.f32.gmra.mxu0 %v180
    %v220 = vpop.f32.mrf.mxu0
    %v221 = vadd.f32 0.0, %v220
    %222 = vdwg.mxu0
    %v223 = vld [vmem:[%s2] sm:$0xff]
    %v224 = vld [vmem:[%s2 + $0x8] sm:$0xff]
    %v225 = vld [vmem:[%s2 + $0x10] sm:$0xff]
    %v226 = vld [vmem:[%s2 + $0x18] sm:$0xff]
    %v227 = vld [vmem:[%s3] sm:$0x1]
    %v229 = vperm.slane %v227, 0
    %231 = vmatpush.msra.mxu0 0.0
    %232 = vmatpush.msra.mxu0 0.0
    %233 = vmatpush.msra.mxu0 0.0
    %234 = vmatpush.msra.mxu0 0.0
    %235 = vmatpush.msra.mxu0 0.0
    %236 = vmatpush.msra.mxu0 0.0
    %237 = vmatpush.msra.mxu0 0.0
    %238 = vmatpush.msra.mxu0 0.0
    %239 = vmatpush.msra.mxu0 0.0
    %240 = vmatpush.msra.mxu0 0.0
    %241 = vmatpush.msra.mxu0 0.0
    %242 = vmatpush.msra.mxu0 0.0
    %243 = vmatpush.msra.mxu0 %v226
    %244 = vmatpush.msra.mxu0 %v225
    %245 = vmatpush.msra.mxu0 %v224
    %246 = vmatpush.msra.mxu0 %v223
    %247 = vmatmul.f32.gmra.mxu0 %v159
    %v248 = vpop.f32.mrf.mxu0
    %v249 = vadd.f32 %v229, %v248
    %250 = vmatmul.f32.gmra.mxu0 %v162
    %v251 = vpop.f32.mrf.mxu0
    %v252 = vadd.f32 %v229, %v251
    %253 = vmatmul.f32.gmra.mxu0 %v165
    %v254 = vpop.f32.mrf.mxu0
    %v255 = vadd.f32 %v229, %v254
    %256 = vmatmul.f32.gmra.mxu0 %v168
    %v257 = vpop.f32.mrf.mxu0
    %v258 = vadd.f32 %v229, %v257
    %259 = vmatmul.f32.gmra.mxu0 %v171
    %v260 = vpop.f32.mrf.mxu0
    %v261 = vadd.f32 %v229, %v260
    %262 = vmatmul.f32.gmra.mxu0 %v174
    %v263 = vpop.f32.mrf.mxu0
    %v264 = vadd.f32 %v229, %v263
    %265 = vmatmul.f32.gmra.mxu0 %v177
    %v266 = vpop.f32.mrf.mxu0
    %v267 = vadd.f32 %v229, %v266
    %268 = vmatmul.f32.gmra.mxu0 %v180
    %v269 = vpop.f32.mrf.mxu0
    %v270 = vadd.f32 %v229, %v269
    %271 = vdwg.mxu0
    %280 = vrot.lane.b32.xlu0 %v249, 96
    %v281 = vpop.permute.xlu0 %280
    %282 = vrot.lane.b32.xlu0 %v252, 96
    %v283 = vpop.permute.xlu0 %282
    %284 = vrot.lane.b32.xlu0 %v255, 96
    %v285 = vpop.permute.xlu0 %284
    %286 = vrot.lane.b32.xlu0 %v258, 96
    %v287 = vpop.permute.xlu0 %286
    %288 = vrot.lane.b32.xlu0 %v261, 96
    %v289 = vpop.permute.xlu0 %288
    %290 = vrot.lane.b32.xlu0 %v264, 96
    %v291 = vpop.permute.xlu0 %290
    %292 = vrot.lane.b32.xlu0 %v267, 96
    %v293 = vpop.permute.xlu0 %292
    %294 = vrot.lane.b32.xlu0 %v270, 96
    %v295 = vpop.permute.xlu0 %294
    %v296 = vsel %vm157, %v249, 0
    %v298 = vsel %vm157, %v252, 0
    %v300 = vsel %vm157, %v255, 0
    %v302 = vsel %vm157, %v258, 0
    %v304 = vsel %vm157, %v261, 0
    %v306 = vsel %vm157, %v264, 0
    %v308 = vsel %vm157, %v267, 0
    %v310 = vsel %vm157, %v270, 0
    %v312 = vsel %vm157, %v281, 0
    %v314 = vsel %vm157, %v283, 0
    %v316 = vsel %vm157, %v285, 0
    %v318 = vsel %vm157, %v287, 0
    %v320 = vsel %vm157, %v289, 0
    %v322 = vsel %vm157, %v291, 0
    %v324 = vsel %vm157, %v293, 0
    %v326 = vsel %vm157, %v295, 0
    %328 = vmatpush.xpose.msra.mxu0 0.0
    %329 = vmatpush.xpose.msra.mxu0 0.0
    %330 = vmatpush.xpose.msra.mxu0 0.0
    %331 = vmatpush.xpose.msra.mxu0 0.0
    %332 = vmatpush.xpose.msra.mxu0 0.0
    %333 = vmatpush.xpose.msra.mxu0 0.0
    %334 = vmatpush.xpose.msra.mxu0 0.0
    %335 = vmatpush.xpose.msra.mxu0 0.0
    %336 = vmatpush.xpose.msra.mxu0 %v326
    %337 = vmatpush.xpose.msra.mxu0 %v324
    %338 = vmatpush.xpose.msra.mxu0 %v322
    %339 = vmatpush.xpose.msra.mxu0 %v320
    %340 = vmatpush.xpose.msra.mxu0 %v318
    %341 = vmatpush.xpose.msra.mxu0 %v316
    %342 = vmatpush.xpose.msra.mxu0 %v314
    %343 = vmatpush.xpose.msra.mxu0 %v312
    %344 = vmatmul.f32.gmra.mxu0 %v296
    %v345 = vpop.f32.mrf.mxu0
    %v346 = vadd.f32 0.0, %v345
    %347 = vmatmul.f32.gmra.mxu0 %v298
    %v348 = vpop.f32.mrf.mxu0
    %v349 = vadd.f32 0.0, %v348
    %350 = vmatmul.f32.gmra.mxu0 %v300
    %v351 = vpop.f32.mrf.mxu0
    %v352 = vadd.f32 0.0, %v351
    %353 = vmatmul.f32.gmra.mxu0 %v302
    %v354 = vpop.f32.mrf.mxu0
    %v355 = vadd.f32 0.0, %v354
    %356 = vmatmul.f32.gmra.mxu0 %v304
    %v357 = vpop.f32.mrf.mxu0
    %v358 = vadd.f32 0.0, %v357
    %359 = vmatmul.f32.gmra.mxu0 %v306
    %v360 = vpop.f32.mrf.mxu0
    %v361 = vadd.f32 0.0, %v360
    %362 = vmatmul.f32.gmra.mxu0 %v308
    %v363 = vpop.f32.mrf.mxu0
    %v364 = vadd.f32 0.0, %v363
    %365 = vmatmul.f32.gmra.mxu0 %v310
    %v366 = vpop.f32.mrf.mxu0
    %v367 = vadd.f32 0.0, %v366
    %368 = vdwg.mxu0
    %v369 = vlaneseq
    %v370 = vand.u32 %v369, 127
    %v371 = vsel %vm34, %v200, -inf
    %372 = vmax.xlane.f32.xlu0 %v371
    %v373 = vpop.xlane.xlu0 %372
    %v374 = vsel %vm34, %v203, -inf
    %375 = vmax.xlane.f32.xlu0 %v374
    %v376 = vpop.xlane.xlu0 %375
    %v377 = vsel %vm34, %v206, -inf
    %378 = vmax.xlane.f32.xlu0 %v377
    %v379 = vpop.xlane.xlu0 %378
    %v380 = vsel %vm34, %v209, -inf
    %381 = vmax.xlane.f32.xlu0 %v380
    %v382 = vpop.xlane.xlu0 %381
    %v383 = vsel %vm34, %v212, -inf
    %384 = vmax.xlane.f32.xlu0 %v383
    %v385 = vpop.xlane.xlu0 %384
    %v386 = vsel %vm34, %v215, -inf
    %387 = vmax.xlane.f32.xlu0 %v386
    %v388 = vpop.xlane.xlu0 %387
    %v389 = vsel %vm34, %v218, -inf
    %390 = vmax.xlane.f32.xlu0 %v389
    %v391 = vpop.xlane.xlu0 %390
    %v392 = vsel %vm34, %v221, -inf
    %393 = vmax.xlane.f32.xlu0 %v392
    %v394 = vpop.xlane.xlu0 %393
    %vm395 = vcmp.ge.f32.partialorder %v200, %v373
    %vm396 = vcmp.ge.f32.partialorder %v203, %v376
    %vm397 = vcmp.ge.f32.partialorder %v206, %v379
    %vm398 = vcmp.ge.f32.partialorder %v209, %v382
    %vm399 = vcmp.ge.f32.partialorder %v212, %v385
    %vm400 = vcmp.ge.f32.partialorder %v215, %v388
    %vm401 = vcmp.ge.f32.partialorder %v218, %v391
    %vm402 = vcmp.ge.f32.partialorder %v221, %v394
    %v403 = vsel %vm395, %v370, 64
    %v404 = vsel %vm396, %v370, 64
    %v405 = vsel %vm397, %v370, 64
    %v406 = vsel %vm398, %v370, 64
    %v407 = vsel %vm399, %v370, 64
    %v408 = vsel %vm400, %v370, 64
    %v409 = vsel %vm401, %v370, 64
    %v410 = vsel %vm402, %v370, 64
    %v411 = vsel %vm34, %v403, 2147483647
    %v412 = vand.u32 %v411, 65535
    %v413 = vshra.s32 %v411, 16
    %v414 = vcvt.s32.f32 %v412
    %v415 = vcvt.s32.f32 %v413
    %416 = vmin.xlane.f32.xlu0 %v415
    %v417 = vpop.xlane.xlu0 %416
    %vm418 = vcmp.eq.f32.partialorder %v415, %v417
    %v419 = vsel %vm418, %v414, inf
    %420 = vmin.xlane.f32.xlu0 %v419
    %v421 = vpop.xlane.xlu0 %420
    %v422 = vcvt.f32.s32 %v421
    %v423 = vcvt.f32.s32 %v417
    %v424 = vshll.u32 %v423, 16
    %v425 = vadd.s32 %v424, %v422
    %v426 = vsel %vm34, %v404, 2147483647
    %v427 = vand.u32 %v426, 65535
    %v428 = vshra.s32 %v426, 16
    %v429 = vcvt.s32.f32 %v427
    %v430 = vcvt.s32.f32 %v428
    %431 = vmin.xlane.f32.xlu0 %v430
    %v432 = vpop.xlane.xlu0 %431
    %vm433 = vcmp.eq.f32.partialorder %v430, %v432
    %v434 = vsel %vm433, %v429, inf
    %435 = vmin.xlane.f32.xlu0 %v434
    %v436 = vpop.xlane.xlu0 %435
    %v437 = vcvt.f32.s32 %v436
    %v438 = vcvt.f32.s32 %v432
    %v439 = vshll.u32 %v438, 16
    %v440 = vadd.s32 %v439, %v437
    %v441 = vsel %vm34, %v405, 2147483647
    %v442 = vand.u32 %v441, 65535
    %v443 = vshra.s32 %v441, 16
    %v444 = vcvt.s32.f32 %v442
    %v445 = vcvt.s32.f32 %v443
    %446 = vmin.xlane.f32.xlu0 %v445
    %v447 = vpop.xlane.xlu0 %446
    %vm448 = vcmp.eq.f32.partialorder %v445, %v447
    %v449 = vsel %vm448, %v444, inf
    %450 = vmin.xlane.f32.xlu0 %v449
    %v451 = vpop.xlane.xlu0 %450
    %v452 = vcvt.f32.s32 %v451
    %v453 = vcvt.f32.s32 %v447
    %v454 = vshll.u32 %v453, 16
    %v455 = vadd.s32 %v454, %v452
    %v456 = vsel %vm34, %v406, 2147483647
    %v457 = vand.u32 %v456, 65535
    %v458 = vshra.s32 %v456, 16
    %v459 = vcvt.s32.f32 %v457
    %v460 = vcvt.s32.f32 %v458
    %461 = vmin.xlane.f32.xlu0 %v460
    %v462 = vpop.xlane.xlu0 %461
    %vm463 = vcmp.eq.f32.partialorder %v460, %v462
    %v464 = vsel %vm463, %v459, inf
    %465 = vmin.xlane.f32.xlu0 %v464
    %v466 = vpop.xlane.xlu0 %465
    %v467 = vcvt.f32.s32 %v466
    %v468 = vcvt.f32.s32 %v462
    %v469 = vshll.u32 %v468, 16
    %v470 = vadd.s32 %v469, %v467
    %v471 = vsel %vm34, %v407, 2147483647
    %v472 = vand.u32 %v471, 65535
    %v473 = vshra.s32 %v471, 16
    %v474 = vcvt.s32.f32 %v472
    %v475 = vcvt.s32.f32 %v473
    %476 = vmin.xlane.f32.xlu0 %v475
    %v477 = vpop.xlane.xlu0 %476
    %vm478 = vcmp.eq.f32.partialorder %v475, %v477
    %v479 = vsel %vm478, %v474, inf
    %480 = vmin.xlane.f32.xlu0 %v479
    %v481 = vpop.xlane.xlu0 %480
    %v482 = vcvt.f32.s32 %v481
    %v483 = vcvt.f32.s32 %v477
    %v484 = vshll.u32 %v483, 16
    %v485 = vadd.s32 %v484, %v482
    %v486 = vsel %vm34, %v408, 2147483647
    %v487 = vand.u32 %v486, 65535
    %v488 = vshra.s32 %v486, 16
    %v489 = vcvt.s32.f32 %v487
    %v490 = vcvt.s32.f32 %v488
    %491 = vmin.xlane.f32.xlu0 %v490
    %v492 = vpop.xlane.xlu0 %491
    %vm493 = vcmp.eq.f32.partialorder %v490, %v492
    %v494 = vsel %vm493, %v489, inf
    %495 = vmin.xlane.f32.xlu0 %v494
    %v496 = vpop.xlane.xlu0 %495
    %v497 = vcvt.f32.s32 %v496
    %v498 = vcvt.f32.s32 %v492
    %v499 = vshll.u32 %v498, 16
    %v500 = vadd.s32 %v499, %v497
    %v501 = vsel %vm34, %v409, 2147483647
    %v502 = vand.u32 %v501, 65535
    %v503 = vshra.s32 %v501, 16
    %v504 = vcvt.s32.f32 %v502
    %v505 = vcvt.s32.f32 %v503
    %506 = vmin.xlane.f32.xlu0 %v505
    %v507 = vpop.xlane.xlu0 %506
    %vm508 = vcmp.eq.f32.partialorder %v505, %v507
    %v509 = vsel %vm508, %v504, inf
    %510 = vmin.xlane.f32.xlu0 %v509
    %v511 = vpop.xlane.xlu0 %510
    %v512 = vcvt.f32.s32 %v511
    %v513 = vcvt.f32.s32 %v507
    %v514 = vshll.u32 %v513, 16
    %v515 = vadd.s32 %v514, %v512
    %v516 = vsel %vm34, %v410, 2147483647
    %v517 = vand.u32 %v516, 65535
    %v518 = vshra.s32 %v516, 16
    %v519 = vcvt.s32.f32 %v517
    %v520 = vcvt.s32.f32 %v518
    %521 = vmin.xlane.f32.xlu0 %v520
    %v522 = vpop.xlane.xlu0 %521
    %vm523 = vcmp.eq.f32.partialorder %v520, %v522
    %v524 = vsel %vm523, %v519, inf
    %525 = vmin.xlane.f32.xlu0 %v524
    %v526 = vpop.xlane.xlu0 %525
    %v527 = vcvt.f32.s32 %v526
    %v528 = vcvt.f32.s32 %v522
    %v529 = vshll.u32 %v528, 16
    %v530 = vadd.s32 %v529, %v527
    %vm531 = vcmp.eq.s32.totalorder %v370, %v425
    %vm532 = vcmp.eq.s32.totalorder %v370, %v440
    %vm533 = vcmp.eq.s32.totalorder %v370, %v455
    %vm534 = vcmp.eq.s32.totalorder %v370, %v470
    %vm535 = vcmp.eq.s32.totalorder %v370, %v485
    %vm536 = vcmp.eq.s32.totalorder %v370, %v500
    %vm537 = vcmp.eq.s32.totalorder %v370, %v515
    %vm538 = vcmp.eq.s32.totalorder %v370, %v530
    %v539 = vsel %vm531, -1e+30, %v200
    %v540 = vsel %vm532, -1e+30, %v203
    %v541 = vsel %vm533, -1e+30, %v206
    %v542 = vsel %vm534, -1e+30, %v209
    %v543 = vsel %vm535, -1e+30, %v212
    %v544 = vsel %vm536, -1e+30, %v215
    %v545 = vsel %vm537, -1e+30, %v218
    %v546 = vsel %vm538, -1e+30, %v221
    %v547 = vsel %vm34, %v539, -inf
    %548 = vmax.xlane.f32.xlu0 %v547
    %v549 = vpop.xlane.xlu0 %548
    %v550 = vsel %vm34, %v540, -inf
    %551 = vmax.xlane.f32.xlu0 %v550
    %v552 = vpop.xlane.xlu0 %551
    %v553 = vsel %vm34, %v541, -inf
    %554 = vmax.xlane.f32.xlu0 %v553
    %v555 = vpop.xlane.xlu0 %554
    %v556 = vsel %vm34, %v542, -inf
    %557 = vmax.xlane.f32.xlu0 %v556
    %v558 = vpop.xlane.xlu0 %557
    %v559 = vsel %vm34, %v543, -inf
    %560 = vmax.xlane.f32.xlu0 %v559
    %v561 = vpop.xlane.xlu0 %560
    %v562 = vsel %vm34, %v544, -inf
    %563 = vmax.xlane.f32.xlu0 %v562
    %v564 = vpop.xlane.xlu0 %563
    %v565 = vsel %vm34, %v545, -inf
    %566 = vmax.xlane.f32.xlu0 %v565
    %v567 = vpop.xlane.xlu0 %566
    %v568 = vsel %vm34, %v546, -inf
    %569 = vmax.xlane.f32.xlu0 %v568
    %v570 = vpop.xlane.xlu0 %569
    %vm571 = vcmp.ge.f32.partialorder %v539, %v549
    %vm572 = vcmp.ge.f32.partialorder %v540, %v552
    %vm573 = vcmp.ge.f32.partialorder %v541, %v555
    %vm574 = vcmp.ge.f32.partialorder %v542, %v558
    %vm575 = vcmp.ge.f32.partialorder %v543, %v561
    %vm576 = vcmp.ge.f32.partialorder %v544, %v564
    %vm577 = vcmp.ge.f32.partialorder %v545, %v567
    %vm578 = vcmp.ge.f32.partialorder %v546, %v570
    %v579 = vsel %vm571, %v370, 64
    %v580 = vsel %vm572, %v370, 64
    %v581 = vsel %vm573, %v370, 64
    %v582 = vsel %vm574, %v370, 64
    %v583 = vsel %vm575, %v370, 64
    %v584 = vsel %vm576, %v370, 64
    %v585 = vsel %vm577, %v370, 64
    %v586 = vsel %vm578, %v370, 64
    %v587 = vsel %vm34, %v579, 2147483647
    %v588 = vand.u32 %v587, 65535
    %v589 = vshra.s32 %v587, 16
    %v590 = vcvt.s32.f32 %v588
    %v591 = vcvt.s32.f32 %v589
    %592 = vmin.xlane.f32.xlu0 %v591
    %v593 = vpop.xlane.xlu0 %592
    %vm594 = vcmp.eq.f32.partialorder %v591, %v593
    %v595 = vsel %vm594, %v590, inf
    %596 = vmin.xlane.f32.xlu0 %v595
    %v597 = vpop.xlane.xlu0 %596
    %v598 = vcvt.f32.s32 %v597
    %v599 = vcvt.f32.s32 %v593
    %v600 = vshll.u32 %v599, 16
    %v601 = vadd.s32 %v600, %v598
    %v602 = vsel %vm34, %v580, 2147483647
    %v603 = vand.u32 %v602, 65535
    %v604 = vshra.s32 %v602, 16
    %v605 = vcvt.s32.f32 %v603
    %v606 = vcvt.s32.f32 %v604
    %607 = vmin.xlane.f32.xlu0 %v606
    %v608 = vpop.xlane.xlu0 %607
    %vm609 = vcmp.eq.f32.partialorder %v606, %v608
    %v610 = vsel %vm609, %v605, inf
    %611 = vmin.xlane.f32.xlu0 %v610
    %v612 = vpop.xlane.xlu0 %611
    %v613 = vcvt.f32.s32 %v612
    %v614 = vcvt.f32.s32 %v608
    %v615 = vshll.u32 %v614, 16
    %v616 = vadd.s32 %v615, %v613
    %v617 = vsel %vm34, %v581, 2147483647
    %v618 = vand.u32 %v617, 65535
    %v619 = vshra.s32 %v617, 16
    %v620 = vcvt.s32.f32 %v618
    %v621 = vcvt.s32.f32 %v619
    %622 = vmin.xlane.f32.xlu0 %v621
    %v623 = vpop.xlane.xlu0 %622
    %vm624 = vcmp.eq.f32.partialorder %v621, %v623
    %v625 = vsel %vm624, %v620, inf
    %626 = vmin.xlane.f32.xlu0 %v625
    %v627 = vpop.xlane.xlu0 %626
    %v628 = vcvt.f32.s32 %v627
    %v629 = vcvt.f32.s32 %v623
    %v630 = vshll.u32 %v629, 16
    %v631 = vadd.s32 %v630, %v628
    %v632 = vsel %vm34, %v582, 2147483647
    %v633 = vand.u32 %v632, 65535
    %v634 = vshra.s32 %v632, 16
    %v635 = vcvt.s32.f32 %v633
    %v636 = vcvt.s32.f32 %v634
    %637 = vmin.xlane.f32.xlu0 %v636
    %v638 = vpop.xlane.xlu0 %637
    %vm639 = vcmp.eq.f32.partialorder %v636, %v638
    %v640 = vsel %vm639, %v635, inf
    %641 = vmin.xlane.f32.xlu0 %v640
    %v642 = vpop.xlane.xlu0 %641
    %v643 = vcvt.f32.s32 %v642
    %v644 = vcvt.f32.s32 %v638
    %v645 = vshll.u32 %v644, 16
    %v646 = vadd.s32 %v645, %v643
    %v647 = vsel %vm34, %v583, 2147483647
    %v648 = vand.u32 %v647, 65535
    %v649 = vshra.s32 %v647, 16
    %v650 = vcvt.s32.f32 %v648
    %v651 = vcvt.s32.f32 %v649
    %652 = vmin.xlane.f32.xlu0 %v651
    %v653 = vpop.xlane.xlu0 %652
    %vm654 = vcmp.eq.f32.partialorder %v651, %v653
    %v655 = vsel %vm654, %v650, inf
    %656 = vmin.xlane.f32.xlu0 %v655
    %v657 = vpop.xlane.xlu0 %656
    %v658 = vcvt.f32.s32 %v657
    %v659 = vcvt.f32.s32 %v653
    %v660 = vshll.u32 %v659, 16
    %v661 = vadd.s32 %v660, %v658
    %v662 = vsel %vm34, %v584, 2147483647
    %v663 = vand.u32 %v662, 65535
    %v664 = vshra.s32 %v662, 16
    %v665 = vcvt.s32.f32 %v663
    %v666 = vcvt.s32.f32 %v664
    %667 = vmin.xlane.f32.xlu0 %v666
    %v668 = vpop.xlane.xlu0 %667
    %vm669 = vcmp.eq.f32.partialorder %v666, %v668
    %v670 = vsel %vm669, %v665, inf
    %671 = vmin.xlane.f32.xlu0 %v670
    %v672 = vpop.xlane.xlu0 %671
    %v673 = vcvt.f32.s32 %v672
    %v674 = vcvt.f32.s32 %v668
    %v675 = vshll.u32 %v674, 16
    %v676 = vadd.s32 %v675, %v673
    %v677 = vsel %vm34, %v585, 2147483647
    %v678 = vand.u32 %v677, 65535
    %v679 = vshra.s32 %v677, 16
    %v680 = vcvt.s32.f32 %v678
    %v681 = vcvt.s32.f32 %v679
    %682 = vmin.xlane.f32.xlu0 %v681
    %v683 = vpop.xlane.xlu0 %682
    %vm684 = vcmp.eq.f32.partialorder %v681, %v683
    %v685 = vsel %vm684, %v680, inf
    %686 = vmin.xlane.f32.xlu0 %v685
    %v687 = vpop.xlane.xlu0 %686
    %v688 = vcvt.f32.s32 %v687
    %v689 = vcvt.f32.s32 %v683
    %v690 = vshll.u32 %v689, 16
    %v691 = vadd.s32 %v690, %v688
    %v692 = vsel %vm34, %v586, 2147483647
    %v693 = vand.u32 %v692, 65535
    %v694 = vshra.s32 %v692, 16
    %v695 = vcvt.s32.f32 %v693
    %v696 = vcvt.s32.f32 %v694
    %697 = vmin.xlane.f32.xlu0 %v696
    %v698 = vpop.xlane.xlu0 %697
    %vm699 = vcmp.eq.f32.partialorder %v696, %v698
    %v700 = vsel %vm699, %v695, inf
    %701 = vmin.xlane.f32.xlu0 %v700
    %v702 = vpop.xlane.xlu0 %701
    %v703 = vcvt.f32.s32 %v702
    %v704 = vcvt.f32.s32 %v698
    %v705 = vshll.u32 %v704, 16
    %v706 = vadd.s32 %v705, %v703
    %vm707 = vcmp.eq.s32.totalorder %v370, %v601
    %vm708 = vcmp.eq.s32.totalorder %v370, %v616
    %vm709 = vcmp.eq.s32.totalorder %v370, %v631
    %vm710 = vcmp.eq.s32.totalorder %v370, %v646
    %vm711 = vcmp.eq.s32.totalorder %v370, %v661
    %vm712 = vcmp.eq.s32.totalorder %v370, %v676
    %vm713 = vcmp.eq.s32.totalorder %v370, %v691
    %vm714 = vcmp.eq.s32.totalorder %v370, %v706
    %vm715 = vmor %vm531, %vm707
    %vm716 = vmor %vm532, %vm708
    %vm717 = vmor %vm533, %vm709
    %vm718 = vmor %vm534, %vm710
    %vm719 = vmor %vm535, %vm711
    %vm720 = vmor %vm536, %vm712
    %vm721 = vmor %vm537, %vm713
    %vm722 = vmor %vm538, %vm714
    %v723 = vsel %vm707, -1e+30, %v539
    %v724 = vsel %vm708, -1e+30, %v540
    %v725 = vsel %vm709, -1e+30, %v541
    %v726 = vsel %vm710, -1e+30, %v542
    %v727 = vsel %vm711, -1e+30, %v543
    %v728 = vsel %vm712, -1e+30, %v544
    %v729 = vsel %vm713, -1e+30, %v545
    %v730 = vsel %vm714, -1e+30, %v546
    %v731 = vsel %vm34, %v723, -inf
    %732 = vmax.xlane.f32.xlu0 %v731
    %v733 = vpop.xlane.xlu0 %732
    %v734 = vsel %vm34, %v724, -inf
    %735 = vmax.xlane.f32.xlu0 %v734
    %v736 = vpop.xlane.xlu0 %735
    %v737 = vsel %vm34, %v725, -inf
    %738 = vmax.xlane.f32.xlu0 %v737
    %v739 = vpop.xlane.xlu0 %738
    %v740 = vsel %vm34, %v726, -inf
    %741 = vmax.xlane.f32.xlu0 %v740
    %v742 = vpop.xlane.xlu0 %741
    %v743 = vsel %vm34, %v727, -inf
    %744 = vmax.xlane.f32.xlu0 %v743
    %v745 = vpop.xlane.xlu0 %744
    %v746 = vsel %vm34, %v728, -inf
    %747 = vmax.xlane.f32.xlu0 %v746
    %v748 = vpop.xlane.xlu0 %747
    %v749 = vsel %vm34, %v729, -inf
    %750 = vmax.xlane.f32.xlu0 %v749
    %v751 = vpop.xlane.xlu0 %750
    %v752 = vsel %vm34, %v730, -inf
    %753 = vmax.xlane.f32.xlu0 %v752
    %v754 = vpop.xlane.xlu0 %753
    %vm755 = vcmp.ge.f32.partialorder %v723, %v733
    %vm756 = vcmp.ge.f32.partialorder %v724, %v736
    %vm757 = vcmp.ge.f32.partialorder %v725, %v739
    %vm758 = vcmp.ge.f32.partialorder %v726, %v742
    %vm759 = vcmp.ge.f32.partialorder %v727, %v745
    %vm760 = vcmp.ge.f32.partialorder %v728, %v748
    %vm761 = vcmp.ge.f32.partialorder %v729, %v751
    %vm762 = vcmp.ge.f32.partialorder %v730, %v754
    %v763 = vsel %vm755, %v370, 64
    %v764 = vsel %vm756, %v370, 64
    %v765 = vsel %vm757, %v370, 64
    %v766 = vsel %vm758, %v370, 64
    %v767 = vsel %vm759, %v370, 64
    %v768 = vsel %vm760, %v370, 64
    %v769 = vsel %vm761, %v370, 64
    %v770 = vsel %vm762, %v370, 64
    %v771 = vsel %vm34, %v763, 2147483647
    %v772 = vand.u32 %v771, 65535
    %v773 = vshra.s32 %v771, 16
    %v774 = vcvt.s32.f32 %v772
    %v775 = vcvt.s32.f32 %v773
    %776 = vmin.xlane.f32.xlu0 %v775
    %v777 = vpop.xlane.xlu0 %776
    %vm778 = vcmp.eq.f32.partialorder %v775, %v777
    %v779 = vsel %vm778, %v774, inf
    %780 = vmin.xlane.f32.xlu0 %v779
    %v781 = vpop.xlane.xlu0 %780
    %v782 = vcvt.f32.s32 %v781
    %v783 = vcvt.f32.s32 %v777
    %v784 = vshll.u32 %v783, 16
    %v785 = vadd.s32 %v784, %v782
    %v786 = vsel %vm34, %v764, 2147483647
    %v787 = vand.u32 %v786, 65535
    %v788 = vshra.s32 %v786, 16
    %v789 = vcvt.s32.f32 %v787
    %v790 = vcvt.s32.f32 %v788
    %791 = vmin.xlane.f32.xlu0 %v790
    %v792 = vpop.xlane.xlu0 %791
    %vm793 = vcmp.eq.f32.partialorder %v790, %v792
    %v794 = vsel %vm793, %v789, inf
    %795 = vmin.xlane.f32.xlu0 %v794
    %v796 = vpop.xlane.xlu0 %795
    %v797 = vcvt.f32.s32 %v796
    %v798 = vcvt.f32.s32 %v792
    %v799 = vshll.u32 %v798, 16
    %v800 = vadd.s32 %v799, %v797
    %v801 = vsel %vm34, %v765, 2147483647
    %v802 = vand.u32 %v801, 65535
    %v803 = vshra.s32 %v801, 16
    %v804 = vcvt.s32.f32 %v802
    %v805 = vcvt.s32.f32 %v803
    %806 = vmin.xlane.f32.xlu0 %v805
    %v807 = vpop.xlane.xlu0 %806
    %vm808 = vcmp.eq.f32.partialorder %v805, %v807
    %v809 = vsel %vm808, %v804, inf
    %810 = vmin.xlane.f32.xlu0 %v809
    %v811 = vpop.xlane.xlu0 %810
    %v812 = vcvt.f32.s32 %v811
    %v813 = vcvt.f32.s32 %v807
    %v814 = vshll.u32 %v813, 16
    %v815 = vadd.s32 %v814, %v812
    %v816 = vsel %vm34, %v766, 2147483647
    %v817 = vand.u32 %v816, 65535
    %v818 = vshra.s32 %v816, 16
    %v819 = vcvt.s32.f32 %v817
    %v820 = vcvt.s32.f32 %v818
    %821 = vmin.xlane.f32.xlu0 %v820
    %v822 = vpop.xlane.xlu0 %821
    %vm823 = vcmp.eq.f32.partialorder %v820, %v822
    %v824 = vsel %vm823, %v819, inf
    %825 = vmin.xlane.f32.xlu0 %v824
    %v826 = vpop.xlane.xlu0 %825
    %v827 = vcvt.f32.s32 %v826
    %v828 = vcvt.f32.s32 %v822
    %v829 = vshll.u32 %v828, 16
    %v830 = vadd.s32 %v829, %v827
    %v831 = vsel %vm34, %v767, 2147483647
    %v832 = vand.u32 %v831, 65535
    %v833 = vshra.s32 %v831, 16
    %v834 = vcvt.s32.f32 %v832
    %v835 = vcvt.s32.f32 %v833
    %836 = vmin.xlane.f32.xlu0 %v835
    %v837 = vpop.xlane.xlu0 %836
    %vm838 = vcmp.eq.f32.partialorder %v835, %v837
    %v839 = vsel %vm838, %v834, inf
    %840 = vmin.xlane.f32.xlu0 %v839
    %v841 = vpop.xlane.xlu0 %840
    %v842 = vcvt.f32.s32 %v841
    %v843 = vcvt.f32.s32 %v837
    %v844 = vshll.u32 %v843, 16
    %v845 = vadd.s32 %v844, %v842
    %v846 = vsel %vm34, %v768, 2147483647
    %v847 = vand.u32 %v846, 65535
    %v848 = vshra.s32 %v846, 16
    %v849 = vcvt.s32.f32 %v847
    %v850 = vcvt.s32.f32 %v848
    %851 = vmin.xlane.f32.xlu0 %v850
    %v852 = vpop.xlane.xlu0 %851
    %vm853 = vcmp.eq.f32.partialorder %v850, %v852
    %v854 = vsel %vm853, %v849, inf
    %855 = vmin.xlane.f32.xlu0 %v854
    %v856 = vpop.xlane.xlu0 %855
    %v857 = vcvt.f32.s32 %v856
    %v858 = vcvt.f32.s32 %v852
    %v859 = vshll.u32 %v858, 16
    %v860 = vadd.s32 %v859, %v857
    %v861 = vsel %vm34, %v769, 2147483647
    %v862 = vand.u32 %v861, 65535
    %v863 = vshra.s32 %v861, 16
    %v864 = vcvt.s32.f32 %v862
    %v865 = vcvt.s32.f32 %v863
    %866 = vmin.xlane.f32.xlu0 %v865
    %v867 = vpop.xlane.xlu0 %866
    %vm868 = vcmp.eq.f32.partialorder %v865, %v867
    %v869 = vsel %vm868, %v864, inf
    %870 = vmin.xlane.f32.xlu0 %v869
    %v871 = vpop.xlane.xlu0 %870
    %v872 = vcvt.f32.s32 %v871
    %v873 = vcvt.f32.s32 %v867
    %v874 = vshll.u32 %v873, 16
    %v875 = vadd.s32 %v874, %v872
    %v876 = vsel %vm34, %v770, 2147483647
    %v877 = vand.u32 %v876, 65535
    %v878 = vshra.s32 %v876, 16
    %v879 = vcvt.s32.f32 %v877
    %v880 = vcvt.s32.f32 %v878
    %881 = vmin.xlane.f32.xlu0 %v880
    %v882 = vpop.xlane.xlu0 %881
    %vm883 = vcmp.eq.f32.partialorder %v880, %v882
    %v884 = vsel %vm883, %v879, inf
    %885 = vmin.xlane.f32.xlu0 %v884
    %v886 = vpop.xlane.xlu0 %885
    %v887 = vcvt.f32.s32 %v886
    %v888 = vcvt.f32.s32 %v882
    %v889 = vshll.u32 %v888, 16
    %v890 = vadd.s32 %v889, %v887
    %vm891 = vcmp.eq.s32.totalorder %v370, %v785
    %vm892 = vcmp.eq.s32.totalorder %v370, %v800
    %vm893 = vcmp.eq.s32.totalorder %v370, %v815
    %vm894 = vcmp.eq.s32.totalorder %v370, %v830
    %vm895 = vcmp.eq.s32.totalorder %v370, %v845
    %vm896 = vcmp.eq.s32.totalorder %v370, %v860
    %vm897 = vcmp.eq.s32.totalorder %v370, %v875
    %vm898 = vcmp.eq.s32.totalorder %v370, %v890
    %vm899 = vmor %vm715, %vm891
    %vm900 = vmor %vm716, %vm892
    %vm901 = vmor %vm717, %vm893
    %vm902 = vmor %vm718, %vm894
    %vm903 = vmor %vm719, %vm895
    %vm904 = vmor %vm720, %vm896
    %vm905 = vmor %vm721, %vm897
    %vm906 = vmor %vm722, %vm898
    %v907 = vsel %vm891, -1e+30, %v723
    %v908 = vsel %vm892, -1e+30, %v724
    %v909 = vsel %vm893, -1e+30, %v725
    %v910 = vsel %vm894, -1e+30, %v726
    %v911 = vsel %vm895, -1e+30, %v727
    %v912 = vsel %vm896, -1e+30, %v728
    %v913 = vsel %vm897, -1e+30, %v729
    %v914 = vsel %vm898, -1e+30, %v730
    %v915 = vsel %vm34, %v907, -inf
    %916 = vmax.xlane.f32.xlu0 %v915
    %v917 = vpop.xlane.xlu0 %916
    %v918 = vsel %vm34, %v908, -inf
    %919 = vmax.xlane.f32.xlu0 %v918
    %v920 = vpop.xlane.xlu0 %919
    %v921 = vsel %vm34, %v909, -inf
    %922 = vmax.xlane.f32.xlu0 %v921
    %v923 = vpop.xlane.xlu0 %922
    %v924 = vsel %vm34, %v910, -inf
    %925 = vmax.xlane.f32.xlu0 %v924
    %v926 = vpop.xlane.xlu0 %925
    %v927 = vsel %vm34, %v911, -inf
    %928 = vmax.xlane.f32.xlu0 %v927
    %v929 = vpop.xlane.xlu0 %928
    %v930 = vsel %vm34, %v912, -inf
    %931 = vmax.xlane.f32.xlu0 %v930
    %v932 = vpop.xlane.xlu0 %931
    %v933 = vsel %vm34, %v913, -inf
    %934 = vmax.xlane.f32.xlu0 %v933
    %v935 = vpop.xlane.xlu0 %934
    %v936 = vsel %vm34, %v914, -inf
    %937 = vmax.xlane.f32.xlu0 %v936
    %v938 = vpop.xlane.xlu0 %937
    %vm939 = vcmp.ge.f32.partialorder %v907, %v917
    %vm940 = vcmp.ge.f32.partialorder %v908, %v920
    %vm941 = vcmp.ge.f32.partialorder %v909, %v923
    %vm942 = vcmp.ge.f32.partialorder %v910, %v926
    %vm943 = vcmp.ge.f32.partialorder %v911, %v929
    %vm944 = vcmp.ge.f32.partialorder %v912, %v932
    %vm945 = vcmp.ge.f32.partialorder %v913, %v935
    %vm946 = vcmp.ge.f32.partialorder %v914, %v938
    %v947 = vsel %vm939, %v370, 64
    %v948 = vsel %vm940, %v370, 64
    %v949 = vsel %vm941, %v370, 64
    %v950 = vsel %vm942, %v370, 64
    %v951 = vsel %vm943, %v370, 64
    %v952 = vsel %vm944, %v370, 64
    %v953 = vsel %vm945, %v370, 64
    %v954 = vsel %vm946, %v370, 64
    %v955 = vsel %vm34, %v947, 2147483647
    %v956 = vand.u32 %v955, 65535
    %v957 = vshra.s32 %v955, 16
    %v958 = vcvt.s32.f32 %v956
    %v959 = vcvt.s32.f32 %v957
    %960 = vmin.xlane.f32.xlu0 %v959
    %v961 = vpop.xlane.xlu0 %960
    %vm962 = vcmp.eq.f32.partialorder %v959, %v961
    %v963 = vsel %vm962, %v958, inf
    %964 = vmin.xlane.f32.xlu0 %v963
    %v965 = vpop.xlane.xlu0 %964
    %v966 = vcvt.f32.s32 %v965
    %v967 = vcvt.f32.s32 %v961
    %v968 = vshll.u32 %v967, 16
    %v969 = vadd.s32 %v968, %v966
    %v970 = vsel %vm34, %v948, 2147483647
    %v971 = vand.u32 %v970, 65535
    %v972 = vshra.s32 %v970, 16
    %v973 = vcvt.s32.f32 %v971
    %v974 = vcvt.s32.f32 %v972
    %975 = vmin.xlane.f32.xlu0 %v974
    %v976 = vpop.xlane.xlu0 %975
    %vm977 = vcmp.eq.f32.partialorder %v974, %v976
    %v978 = vsel %vm977, %v973, inf
    %979 = vmin.xlane.f32.xlu0 %v978
    %v980 = vpop.xlane.xlu0 %979
    %v981 = vcvt.f32.s32 %v980
    %v982 = vcvt.f32.s32 %v976
    %v983 = vshll.u32 %v982, 16
    %v984 = vadd.s32 %v983, %v981
    %v985 = vsel %vm34, %v949, 2147483647
    %v986 = vand.u32 %v985, 65535
    %v987 = vshra.s32 %v985, 16
    %v988 = vcvt.s32.f32 %v986
    %v989 = vcvt.s32.f32 %v987
    %990 = vmin.xlane.f32.xlu0 %v989
    %v991 = vpop.xlane.xlu0 %990
    %vm992 = vcmp.eq.f32.partialorder %v989, %v991
    %v993 = vsel %vm992, %v988, inf
    %994 = vmin.xlane.f32.xlu0 %v993
    %v995 = vpop.xlane.xlu0 %994
    %v996 = vcvt.f32.s32 %v995
    %v997 = vcvt.f32.s32 %v991
    %v998 = vshll.u32 %v997, 16
    %v999 = vadd.s32 %v998, %v996
    %v1000 = vsel %vm34, %v950, 2147483647
    %v1001 = vand.u32 %v1000, 65535
    %v1002 = vshra.s32 %v1000, 16
    %v1003 = vcvt.s32.f32 %v1001
    %v1004 = vcvt.s32.f32 %v1002
    %1005 = vmin.xlane.f32.xlu0 %v1004
    %v1006 = vpop.xlane.xlu0 %1005
    %vm1007 = vcmp.eq.f32.partialorder %v1004, %v1006
    %v1008 = vsel %vm1007, %v1003, inf
    %1009 = vmin.xlane.f32.xlu0 %v1008
    %v1010 = vpop.xlane.xlu0 %1009
    %v1011 = vcvt.f32.s32 %v1010
    %v1012 = vcvt.f32.s32 %v1006
    %v1013 = vshll.u32 %v1012, 16
    %v1014 = vadd.s32 %v1013, %v1011
    %v1015 = vsel %vm34, %v951, 2147483647
    %v1016 = vand.u32 %v1015, 65535
    %v1017 = vshra.s32 %v1015, 16
    %v1018 = vcvt.s32.f32 %v1016
    %v1019 = vcvt.s32.f32 %v1017
    %1020 = vmin.xlane.f32.xlu0 %v1019
    %v1021 = vpop.xlane.xlu0 %1020
    %vm1022 = vcmp.eq.f32.partialorder %v1019, %v1021
    %v1023 = vsel %vm1022, %v1018, inf
    %1024 = vmin.xlane.f32.xlu0 %v1023
    %v1025 = vpop.xlane.xlu0 %1024
    %v1026 = vcvt.f32.s32 %v1025
    %v1027 = vcvt.f32.s32 %v1021
    %v1028 = vshll.u32 %v1027, 16
    %v1029 = vadd.s32 %v1028, %v1026
    %v1030 = vsel %vm34, %v952, 2147483647
    %v1031 = vand.u32 %v1030, 65535
    %v1032 = vshra.s32 %v1030, 16
    %v1033 = vcvt.s32.f32 %v1031
    %v1034 = vcvt.s32.f32 %v1032
    %1035 = vmin.xlane.f32.xlu0 %v1034
    %v1036 = vpop.xlane.xlu0 %1035
    %vm1037 = vcmp.eq.f32.partialorder %v1034, %v1036
    %v1038 = vsel %vm1037, %v1033, inf
    %1039 = vmin.xlane.f32.xlu0 %v1038
    %v1040 = vpop.xlane.xlu0 %1039
    %v1041 = vcvt.f32.s32 %v1040
    %v1042 = vcvt.f32.s32 %v1036
    %v1043 = vshll.u32 %v1042, 16
    %v1044 = vadd.s32 %v1043, %v1041
    %v1045 = vsel %vm34, %v953, 2147483647
    %v1046 = vand.u32 %v1045, 65535
    %v1047 = vshra.s32 %v1045, 16
    %v1048 = vcvt.s32.f32 %v1046
    %v1049 = vcvt.s32.f32 %v1047
    %1050 = vmin.xlane.f32.xlu0 %v1049
    %v1051 = vpop.xlane.xlu0 %1050
    %vm1052 = vcmp.eq.f32.partialorder %v1049, %v1051
    %v1053 = vsel %vm1052, %v1048, inf
    %1054 = vmin.xlane.f32.xlu0 %v1053
    %v1055 = vpop.xlane.xlu0 %1054
    %v1056 = vcvt.f32.s32 %v1055
    %v1057 = vcvt.f32.s32 %v1051
    %v1058 = vshll.u32 %v1057, 16
    %v1059 = vadd.s32 %v1058, %v1056
    %v1060 = vsel %vm34, %v954, 2147483647
    %v1061 = vand.u32 %v1060, 65535
    %v1062 = vshra.s32 %v1060, 16
    %v1063 = vcvt.s32.f32 %v1061
    %v1064 = vcvt.s32.f32 %v1062
    %1065 = vmin.xlane.f32.xlu0 %v1064
    %v1066 = vpop.xlane.xlu0 %1065
    %vm1067 = vcmp.eq.f32.partialorder %v1064, %v1066
    %v1068 = vsel %vm1067, %v1063, inf
    %1069 = vmin.xlane.f32.xlu0 %v1068
    %v1070 = vpop.xlane.xlu0 %1069
    %v1071 = vcvt.f32.s32 %v1070
    %v1072 = vcvt.f32.s32 %v1066
    %v1073 = vshll.u32 %v1072, 16
    %v1074 = vadd.s32 %v1073, %v1071
    %vm1075 = vcmp.eq.s32.totalorder %v370, %v969
    %vm1076 = vcmp.eq.s32.totalorder %v370, %v984
    %vm1077 = vcmp.eq.s32.totalorder %v370, %v999
    %vm1078 = vcmp.eq.s32.totalorder %v370, %v1014
    %vm1079 = vcmp.eq.s32.totalorder %v370, %v1029
    %vm1080 = vcmp.eq.s32.totalorder %v370, %v1044
    %vm1081 = vcmp.eq.s32.totalorder %v370, %v1059
    %vm1082 = vcmp.eq.s32.totalorder %v370, %v1074
    %vm1083 = vmor %vm899, %vm1075
    %vm1084 = vmor %vm900, %vm1076
    %vm1085 = vmor %vm901, %vm1077
    %vm1086 = vmor %vm902, %vm1078
    %vm1087 = vmor %vm903, %vm1079
    %vm1088 = vmor %vm904, %vm1080
    %vm1089 = vmor %vm905, %vm1081
    %vm1090 = vmor %vm906, %vm1082
    %v1091 = vsel %vm1075, -1e+30, %v907
    %v1092 = vsel %vm1076, -1e+30, %v908
    %v1093 = vsel %vm1077, -1e+30, %v909
    %v1094 = vsel %vm1078, -1e+30, %v910
    %v1095 = vsel %vm1079, -1e+30, %v911
    %v1096 = vsel %vm1080, -1e+30, %v912
    %v1097 = vsel %vm1081, -1e+30, %v913
    %v1098 = vsel %vm1082, -1e+30, %v914
    %v1099 = vsel %vm34, %v1091, -inf
    %1100 = vmax.xlane.f32.xlu0 %v1099
    %v1101 = vpop.xlane.xlu0 %1100
    %v1102 = vsel %vm34, %v1092, -inf
    %1103 = vmax.xlane.f32.xlu0 %v1102
    %v1104 = vpop.xlane.xlu0 %1103
    %v1105 = vsel %vm34, %v1093, -inf
    %1106 = vmax.xlane.f32.xlu0 %v1105
    %v1107 = vpop.xlane.xlu0 %1106
    %v1108 = vsel %vm34, %v1094, -inf
    %1109 = vmax.xlane.f32.xlu0 %v1108
    %v1110 = vpop.xlane.xlu0 %1109
    %v1111 = vsel %vm34, %v1095, -inf
    %1112 = vmax.xlane.f32.xlu0 %v1111
    %v1113 = vpop.xlane.xlu0 %1112
    %v1114 = vsel %vm34, %v1096, -inf
    %1115 = vmax.xlane.f32.xlu0 %v1114
    %v1116 = vpop.xlane.xlu0 %1115
    %v1117 = vsel %vm34, %v1097, -inf
    %1118 = vmax.xlane.f32.xlu0 %v1117
    %v1119 = vpop.xlane.xlu0 %1118
    %v1120 = vsel %vm34, %v1098, -inf
    %1121 = vmax.xlane.f32.xlu0 %v1120
    %v1122 = vpop.xlane.xlu0 %1121
    %vm1123 = vcmp.ge.f32.partialorder %v1091, %v1101
    %vm1124 = vcmp.ge.f32.partialorder %v1092, %v1104
    %vm1125 = vcmp.ge.f32.partialorder %v1093, %v1107
    %vm1126 = vcmp.ge.f32.partialorder %v1094, %v1110
    %vm1127 = vcmp.ge.f32.partialorder %v1095, %v1113
    %vm1128 = vcmp.ge.f32.partialorder %v1096, %v1116
    %vm1129 = vcmp.ge.f32.partialorder %v1097, %v1119
    %vm1130 = vcmp.ge.f32.partialorder %v1098, %v1122
    %v1131 = vsel %vm1123, %v370, 64
    %v1132 = vsel %vm1124, %v370, 64
    %v1133 = vsel %vm1125, %v370, 64
    %v1134 = vsel %vm1126, %v370, 64
    %v1135 = vsel %vm1127, %v370, 64
    %v1136 = vsel %vm1128, %v370, 64
    %v1137 = vsel %vm1129, %v370, 64
    %v1138 = vsel %vm1130, %v370, 64
    %v1139 = vsel %vm34, %v1131, 2147483647
    %v1140 = vand.u32 %v1139, 65535
    %v1141 = vshra.s32 %v1139, 16
    %v1142 = vcvt.s32.f32 %v1140
    %v1143 = vcvt.s32.f32 %v1141
    %1144 = vmin.xlane.f32.xlu0 %v1143
    %v1145 = vpop.xlane.xlu0 %1144
    %vm1146 = vcmp.eq.f32.partialorder %v1143, %v1145
    %v1147 = vsel %vm1146, %v1142, inf
    %1148 = vmin.xlane.f32.xlu0 %v1147
    %v1149 = vpop.xlane.xlu0 %1148
    %v1150 = vcvt.f32.s32 %v1149
    %v1151 = vcvt.f32.s32 %v1145
    %v1152 = vshll.u32 %v1151, 16
    %v1153 = vadd.s32 %v1152, %v1150
    %v1154 = vsel %vm34, %v1132, 2147483647
    %v1155 = vand.u32 %v1154, 65535
    %v1156 = vshra.s32 %v1154, 16
    %v1157 = vcvt.s32.f32 %v1155
    %v1158 = vcvt.s32.f32 %v1156
    %1159 = vmin.xlane.f32.xlu0 %v1158
    %v1160 = vpop.xlane.xlu0 %1159
    %vm1161 = vcmp.eq.f32.partialorder %v1158, %v1160
    %v1162 = vsel %vm1161, %v1157, inf
    %1163 = vmin.xlane.f32.xlu0 %v1162
    %v1164 = vpop.xlane.xlu0 %1163
    %v1165 = vcvt.f32.s32 %v1164
    %v1166 = vcvt.f32.s32 %v1160
    %v1167 = vshll.u32 %v1166, 16
    %v1168 = vadd.s32 %v1167, %v1165
    %v1169 = vsel %vm34, %v1133, 2147483647
    %v1170 = vand.u32 %v1169, 65535
    %v1171 = vshra.s32 %v1169, 16
    %v1172 = vcvt.s32.f32 %v1170
    %v1173 = vcvt.s32.f32 %v1171
    %1174 = vmin.xlane.f32.xlu0 %v1173
    %v1175 = vpop.xlane.xlu0 %1174
    %vm1176 = vcmp.eq.f32.partialorder %v1173, %v1175
    %v1177 = vsel %vm1176, %v1172, inf
    %1178 = vmin.xlane.f32.xlu0 %v1177
    %v1179 = vpop.xlane.xlu0 %1178
    %v1180 = vcvt.f32.s32 %v1179
    %v1181 = vcvt.f32.s32 %v1175
    %v1182 = vshll.u32 %v1181, 16
    %v1183 = vadd.s32 %v1182, %v1180
    %v1184 = vsel %vm34, %v1134, 2147483647
    %v1185 = vand.u32 %v1184, 65535
    %v1186 = vshra.s32 %v1184, 16
    %v1187 = vcvt.s32.f32 %v1185
    %v1188 = vcvt.s32.f32 %v1186
    %1189 = vmin.xlane.f32.xlu0 %v1188
    %v1190 = vpop.xlane.xlu0 %1189
    %vm1191 = vcmp.eq.f32.partialorder %v1188, %v1190
    %v1192 = vsel %vm1191, %v1187, inf
    %1193 = vmin.xlane.f32.xlu0 %v1192
    %v1194 = vpop.xlane.xlu0 %1193
    %v1195 = vcvt.f32.s32 %v1194
    %v1196 = vcvt.f32.s32 %v1190
    %v1197 = vshll.u32 %v1196, 16
    %v1198 = vadd.s32 %v1197, %v1195
    %v1199 = vsel %vm34, %v1135, 2147483647
    %v1200 = vand.u32 %v1199, 65535
    %v1201 = vshra.s32 %v1199, 16
    %v1202 = vcvt.s32.f32 %v1200
    %v1203 = vcvt.s32.f32 %v1201
    %1204 = vmin.xlane.f32.xlu0 %v1203
    %v1205 = vpop.xlane.xlu0 %1204
    %vm1206 = vcmp.eq.f32.partialorder %v1203, %v1205
    %v1207 = vsel %vm1206, %v1202, inf
    %1208 = vmin.xlane.f32.xlu0 %v1207
    %v1209 = vpop.xlane.xlu0 %1208
    %v1210 = vcvt.f32.s32 %v1209
    %v1211 = vcvt.f32.s32 %v1205
    %v1212 = vshll.u32 %v1211, 16
    %v1213 = vadd.s32 %v1212, %v1210
    %v1214 = vsel %vm34, %v1136, 2147483647
    %v1215 = vand.u32 %v1214, 65535
    %v1216 = vshra.s32 %v1214, 16
    %v1217 = vcvt.s32.f32 %v1215
    %v1218 = vcvt.s32.f32 %v1216
    %1219 = vmin.xlane.f32.xlu0 %v1218
    %v1220 = vpop.xlane.xlu0 %1219
    %vm1221 = vcmp.eq.f32.partialorder %v1218, %v1220
    %v1222 = vsel %vm1221, %v1217, inf
    %1223 = vmin.xlane.f32.xlu0 %v1222
    %v1224 = vpop.xlane.xlu0 %1223
    %v1225 = vcvt.f32.s32 %v1224
    %v1226 = vcvt.f32.s32 %v1220
    %v1227 = vshll.u32 %v1226, 16
    %v1228 = vadd.s32 %v1227, %v1225
    %v1229 = vsel %vm34, %v1137, 2147483647
    %v1230 = vand.u32 %v1229, 65535
    %v1231 = vshra.s32 %v1229, 16
    %v1232 = vcvt.s32.f32 %v1230
    %v1233 = vcvt.s32.f32 %v1231
    %1234 = vmin.xlane.f32.xlu0 %v1233
    %v1235 = vpop.xlane.xlu0 %1234
    %vm1236 = vcmp.eq.f32.partialorder %v1233, %v1235
    %v1237 = vsel %vm1236, %v1232, inf
    %1238 = vmin.xlane.f32.xlu0 %v1237
    %v1239 = vpop.xlane.xlu0 %1238
    %v1240 = vcvt.f32.s32 %v1239
    %v1241 = vcvt.f32.s32 %v1235
    %v1242 = vshll.u32 %v1241, 16
    %v1243 = vadd.s32 %v1242, %v1240
    %v1244 = vsel %vm34, %v1138, 2147483647
    %v1245 = vand.u32 %v1244, 65535
    %v1246 = vshra.s32 %v1244, 16
    %v1247 = vcvt.s32.f32 %v1245
    %v1248 = vcvt.s32.f32 %v1246
    %1249 = vmin.xlane.f32.xlu0 %v1248
    %v1250 = vpop.xlane.xlu0 %1249
    %vm1251 = vcmp.eq.f32.partialorder %v1248, %v1250
    %v1252 = vsel %vm1251, %v1247, inf
    %1253 = vmin.xlane.f32.xlu0 %v1252
    %v1254 = vpop.xlane.xlu0 %1253
    %v1255 = vcvt.f32.s32 %v1254
    %v1256 = vcvt.f32.s32 %v1250
    %v1257 = vshll.u32 %v1256, 16
    %v1258 = vadd.s32 %v1257, %v1255
    %vm1259 = vcmp.eq.s32.totalorder %v370, %v1153
    %vm1260 = vcmp.eq.s32.totalorder %v370, %v1168
    %vm1261 = vcmp.eq.s32.totalorder %v370, %v1183
    %vm1262 = vcmp.eq.s32.totalorder %v370, %v1198
    %vm1263 = vcmp.eq.s32.totalorder %v370, %v1213
    %vm1264 = vcmp.eq.s32.totalorder %v370, %v1228
    %vm1265 = vcmp.eq.s32.totalorder %v370, %v1243
    %vm1266 = vcmp.eq.s32.totalorder %v370, %v1258
    %vm1267 = vmor %vm1083, %vm1259
    %vm1268 = vmor %vm1084, %vm1260
    %vm1269 = vmor %vm1085, %vm1261
    %vm1270 = vmor %vm1086, %vm1262
    %vm1271 = vmor %vm1087, %vm1263
    %vm1272 = vmor %vm1088, %vm1264
    %vm1273 = vmor %vm1089, %vm1265
    %vm1274 = vmor %vm1090, %vm1266
    %v1275 = vsel %vm1259, -1e+30, %v1091
    %v1276 = vsel %vm1260, -1e+30, %v1092
    %v1277 = vsel %vm1261, -1e+30, %v1093
    %v1278 = vsel %vm1262, -1e+30, %v1094
    %v1279 = vsel %vm1263, -1e+30, %v1095
    %v1280 = vsel %vm1264, -1e+30, %v1096
    %v1281 = vsel %vm1265, -1e+30, %v1097
    %v1282 = vsel %vm1266, -1e+30, %v1098
    %v1283 = vsel %vm34, %v1275, -inf
    %1284 = vmax.xlane.f32.xlu0 %v1283
    %v1285 = vpop.xlane.xlu0 %1284
    %v1286 = vsel %vm34, %v1276, -inf
    %1287 = vmax.xlane.f32.xlu0 %v1286
    %v1288 = vpop.xlane.xlu0 %1287
    %v1289 = vsel %vm34, %v1277, -inf
    %1290 = vmax.xlane.f32.xlu0 %v1289
    %v1291 = vpop.xlane.xlu0 %1290
    %v1292 = vsel %vm34, %v1278, -inf
    %1293 = vmax.xlane.f32.xlu0 %v1292
    %v1294 = vpop.xlane.xlu0 %1293
    %v1295 = vsel %vm34, %v1279, -inf
    %1296 = vmax.xlane.f32.xlu0 %v1295
    %v1297 = vpop.xlane.xlu0 %1296
    %v1298 = vsel %vm34, %v1280, -inf
    %1299 = vmax.xlane.f32.xlu0 %v1298
    %v1300 = vpop.xlane.xlu0 %1299
    %v1301 = vsel %vm34, %v1281, -inf
    %1302 = vmax.xlane.f32.xlu0 %v1301
    %v1303 = vpop.xlane.xlu0 %1302
    %v1304 = vsel %vm34, %v1282, -inf
    %1305 = vmax.xlane.f32.xlu0 %v1304
    %v1306 = vpop.xlane.xlu0 %1305
    %vm1307 = vcmp.ge.f32.partialorder %v1275, %v1285
    %vm1308 = vcmp.ge.f32.partialorder %v1276, %v1288
    %vm1309 = vcmp.ge.f32.partialorder %v1277, %v1291
    %vm1310 = vcmp.ge.f32.partialorder %v1278, %v1294
    %vm1311 = vcmp.ge.f32.partialorder %v1279, %v1297
    %vm1312 = vcmp.ge.f32.partialorder %v1280, %v1300
    %vm1313 = vcmp.ge.f32.partialorder %v1281, %v1303
    %vm1314 = vcmp.ge.f32.partialorder %v1282, %v1306
    %v1315 = vsel %vm1307, %v370, 64
    %v1316 = vsel %vm1308, %v370, 64
    %v1317 = vsel %vm1309, %v370, 64
    %v1318 = vsel %vm1310, %v370, 64
    %v1319 = vsel %vm1311, %v370, 64
    %v1320 = vsel %vm1312, %v370, 64
    %v1321 = vsel %vm1313, %v370, 64
    %v1322 = vsel %vm1314, %v370, 64
    %v1323 = vsel %vm34, %v1315, 2147483647
    %v1324 = vand.u32 %v1323, 65535
    %v1325 = vshra.s32 %v1323, 16
    %v1326 = vcvt.s32.f32 %v1324
    %v1327 = vcvt.s32.f32 %v1325
    %1328 = vmin.xlane.f32.xlu0 %v1327
    %v1329 = vpop.xlane.xlu0 %1328
    %vm1330 = vcmp.eq.f32.partialorder %v1327, %v1329
    %v1331 = vsel %vm1330, %v1326, inf
    %1332 = vmin.xlane.f32.xlu0 %v1331
    %v1333 = vpop.xlane.xlu0 %1332
    %v1334 = vcvt.f32.s32 %v1333
    %v1335 = vcvt.f32.s32 %v1329
    %v1336 = vshll.u32 %v1335, 16
    %v1337 = vadd.s32 %v1336, %v1334
    %v1338 = vsel %vm34, %v1316, 2147483647
    %v1339 = vand.u32 %v1338, 65535
    %v1340 = vshra.s32 %v1338, 16
    %v1341 = vcvt.s32.f32 %v1339
    %v1342 = vcvt.s32.f32 %v1340
    %1343 = vmin.xlane.f32.xlu0 %v1342
    %v1344 = vpop.xlane.xlu0 %1343
    %vm1345 = vcmp.eq.f32.partialorder %v1342, %v1344
    %v1346 = vsel %vm1345, %v1341, inf
    %1347 = vmin.xlane.f32.xlu0 %v1346
    %v1348 = vpop.xlane.xlu0 %1347
    %v1349 = vcvt.f32.s32 %v1348
    %v1350 = vcvt.f32.s32 %v1344
    %v1351 = vshll.u32 %v1350, 16
    %v1352 = vadd.s32 %v1351, %v1349
    %v1353 = vsel %vm34, %v1317, 2147483647
    %v1354 = vand.u32 %v1353, 65535
    %v1355 = vshra.s32 %v1353, 16
    %v1356 = vcvt.s32.f32 %v1354
    %v1357 = vcvt.s32.f32 %v1355
    %1358 = vmin.xlane.f32.xlu0 %v1357
    %v1359 = vpop.xlane.xlu0 %1358
    %vm1360 = vcmp.eq.f32.partialorder %v1357, %v1359
    %v1361 = vsel %vm1360, %v1356, inf
    %1362 = vmin.xlane.f32.xlu0 %v1361
    %v1363 = vpop.xlane.xlu0 %1362
    %v1364 = vcvt.f32.s32 %v1363
    %v1365 = vcvt.f32.s32 %v1359
    %v1366 = vshll.u32 %v1365, 16
    %v1367 = vadd.s32 %v1366, %v1364
    %v1368 = vsel %vm34, %v1318, 2147483647
    %v1369 = vand.u32 %v1368, 65535
    %v1370 = vshra.s32 %v1368, 16
    %v1371 = vcvt.s32.f32 %v1369
    %v1372 = vcvt.s32.f32 %v1370
    %1373 = vmin.xlane.f32.xlu0 %v1372
    %v1374 = vpop.xlane.xlu0 %1373
    %vm1375 = vcmp.eq.f32.partialorder %v1372, %v1374
    %v1376 = vsel %vm1375, %v1371, inf
    %1377 = vmin.xlane.f32.xlu0 %v1376
    %v1378 = vpop.xlane.xlu0 %1377
    %v1379 = vcvt.f32.s32 %v1378
    %v1380 = vcvt.f32.s32 %v1374
    %v1381 = vshll.u32 %v1380, 16
    %v1382 = vadd.s32 %v1381, %v1379
    %v1383 = vsel %vm34, %v1319, 2147483647
    %v1384 = vand.u32 %v1383, 65535
    %v1385 = vshra.s32 %v1383, 16
    %v1386 = vcvt.s32.f32 %v1384
    %v1387 = vcvt.s32.f32 %v1385
    %1388 = vmin.xlane.f32.xlu0 %v1387
    %v1389 = vpop.xlane.xlu0 %1388
    %vm1390 = vcmp.eq.f32.partialorder %v1387, %v1389
    %v1391 = vsel %vm1390, %v1386, inf
    %1392 = vmin.xlane.f32.xlu0 %v1391
    %v1393 = vpop.xlane.xlu0 %1392
    %v1394 = vcvt.f32.s32 %v1393
    %v1395 = vcvt.f32.s32 %v1389
    %v1396 = vshll.u32 %v1395, 16
    %v1397 = vadd.s32 %v1396, %v1394
    %v1398 = vsel %vm34, %v1320, 2147483647
    %v1399 = vand.u32 %v1398, 65535
    %v1400 = vshra.s32 %v1398, 16
    %v1401 = vcvt.s32.f32 %v1399
    %v1402 = vcvt.s32.f32 %v1400
    %1403 = vmin.xlane.f32.xlu0 %v1402
    %v1404 = vpop.xlane.xlu0 %1403
    %vm1405 = vcmp.eq.f32.partialorder %v1402, %v1404
    %v1406 = vsel %vm1405, %v1401, inf
    %1407 = vmin.xlane.f32.xlu0 %v1406
    %v1408 = vpop.xlane.xlu0 %1407
    %v1409 = vcvt.f32.s32 %v1408
    %v1410 = vcvt.f32.s32 %v1404
    %v1411 = vshll.u32 %v1410, 16
    %v1412 = vadd.s32 %v1411, %v1409
    %v1413 = vsel %vm34, %v1321, 2147483647
    %v1414 = vand.u32 %v1413, 65535
    %v1415 = vshra.s32 %v1413, 16
    %v1416 = vcvt.s32.f32 %v1414
    %v1417 = vcvt.s32.f32 %v1415
    %1418 = vmin.xlane.f32.xlu0 %v1417
    %v1419 = vpop.xlane.xlu0 %1418
    %vm1420 = vcmp.eq.f32.partialorder %v1417, %v1419
    %v1421 = vsel %vm1420, %v1416, inf
    %1422 = vmin.xlane.f32.xlu0 %v1421
    %v1423 = vpop.xlane.xlu0 %1422
    %v1424 = vcvt.f32.s32 %v1423
    %v1425 = vcvt.f32.s32 %v1419
    %v1426 = vshll.u32 %v1425, 16
    %v1427 = vadd.s32 %v1426, %v1424
    %v1428 = vsel %vm34, %v1322, 2147483647
    %v1429 = vand.u32 %v1428, 65535
    %v1430 = vshra.s32 %v1428, 16
    %v1431 = vcvt.s32.f32 %v1429
    %v1432 = vcvt.s32.f32 %v1430
    %1433 = vmin.xlane.f32.xlu0 %v1432
    %v1434 = vpop.xlane.xlu0 %1433
    %vm1435 = vcmp.eq.f32.partialorder %v1432, %v1434
    %v1436 = vsel %vm1435, %v1431, inf
    %1437 = vmin.xlane.f32.xlu0 %v1436
    %v1438 = vpop.xlane.xlu0 %1437
    %v1439 = vcvt.f32.s32 %v1438
    %v1440 = vcvt.f32.s32 %v1434
    %v1441 = vshll.u32 %v1440, 16
    %v1442 = vadd.s32 %v1441, %v1439
    %vm1443 = vcmp.eq.s32.totalorder %v370, %v1337
    %vm1444 = vcmp.eq.s32.totalorder %v370, %v1352
    %vm1445 = vcmp.eq.s32.totalorder %v370, %v1367
    %vm1446 = vcmp.eq.s32.totalorder %v370, %v1382
    %vm1447 = vcmp.eq.s32.totalorder %v370, %v1397
    %vm1448 = vcmp.eq.s32.totalorder %v370, %v1412
    %vm1449 = vcmp.eq.s32.totalorder %v370, %v1427
    %vm1450 = vcmp.eq.s32.totalorder %v370, %v1442
    %vm1451 = vmor %vm1267, %vm1443
    %vm1452 = vmor %vm1268, %vm1444
    %vm1453 = vmor %vm1269, %vm1445
    %vm1454 = vmor %vm1270, %vm1446
    %vm1455 = vmor %vm1271, %vm1447
    %vm1456 = vmor %vm1272, %vm1448
    %vm1457 = vmor %vm1273, %vm1449
    %vm1458 = vmor %vm1274, %vm1450
    %v1459 = vsel %vm1443, -1e+30, %v1275
    %v1460 = vsel %vm1444, -1e+30, %v1276
    %v1461 = vsel %vm1445, -1e+30, %v1277
    %v1462 = vsel %vm1446, -1e+30, %v1278
    %v1463 = vsel %vm1447, -1e+30, %v1279
    %v1464 = vsel %vm1448, -1e+30, %v1280
    %v1465 = vsel %vm1449, -1e+30, %v1281
    %v1466 = vsel %vm1450, -1e+30, %v1282
    %v1467 = vsel %vm34, %v1459, -inf
    %1468 = vmax.xlane.f32.xlu0 %v1467
    %v1469 = vpop.xlane.xlu0 %1468
    %v1470 = vsel %vm34, %v1460, -inf
    %1471 = vmax.xlane.f32.xlu0 %v1470
    %v1472 = vpop.xlane.xlu0 %1471
    %v1473 = vsel %vm34, %v1461, -inf
    %1474 = vmax.xlane.f32.xlu0 %v1473
    %v1475 = vpop.xlane.xlu0 %1474
    %v1476 = vsel %vm34, %v1462, -inf
    %1477 = vmax.xlane.f32.xlu0 %v1476
    %v1478 = vpop.xlane.xlu0 %1477
    %v1479 = vsel %vm34, %v1463, -inf
    %1480 = vmax.xlane.f32.xlu0 %v1479
    %v1481 = vpop.xlane.xlu0 %1480
    %v1482 = vsel %vm34, %v1464, -inf
    %1483 = vmax.xlane.f32.xlu0 %v1482
    %v1484 = vpop.xlane.xlu0 %1483
    %v1485 = vsel %vm34, %v1465, -inf
    %1486 = vmax.xlane.f32.xlu0 %v1485
    %v1487 = vpop.xlane.xlu0 %1486
    %v1488 = vsel %vm34, %v1466, -inf
    %1489 = vmax.xlane.f32.xlu0 %v1488
    %v1490 = vpop.xlane.xlu0 %1489
    %vm1491 = vcmp.ge.f32.partialorder %v1459, %v1469
    %vm1492 = vcmp.ge.f32.partialorder %v1460, %v1472
    %vm1493 = vcmp.ge.f32.partialorder %v1461, %v1475
    %vm1494 = vcmp.ge.f32.partialorder %v1462, %v1478
    %vm1495 = vcmp.ge.f32.partialorder %v1463, %v1481
    %vm1496 = vcmp.ge.f32.partialorder %v1464, %v1484
    %vm1497 = vcmp.ge.f32.partialorder %v1465, %v1487
    %vm1498 = vcmp.ge.f32.partialorder %v1466, %v1490
    %v1499 = vsel %vm1491, %v370, 64
    %v1500 = vsel %vm1492, %v370, 64
    %v1501 = vsel %vm1493, %v370, 64
    %v1502 = vsel %vm1494, %v370, 64
    %v1503 = vsel %vm1495, %v370, 64
    %v1504 = vsel %vm1496, %v370, 64
    %v1505 = vsel %vm1497, %v370, 64
    %v1506 = vsel %vm1498, %v370, 64
    %v1507 = vsel %vm34, %v1499, 2147483647
    %v1508 = vand.u32 %v1507, 65535
    %v1509 = vshra.s32 %v1507, 16
    %v1510 = vcvt.s32.f32 %v1508
    %v1511 = vcvt.s32.f32 %v1509
    %1512 = vmin.xlane.f32.xlu0 %v1511
    %v1513 = vpop.xlane.xlu0 %1512
    %vm1514 = vcmp.eq.f32.partialorder %v1511, %v1513
    %v1515 = vsel %vm1514, %v1510, inf
    %1516 = vmin.xlane.f32.xlu0 %v1515
    %v1517 = vpop.xlane.xlu0 %1516
    %v1518 = vcvt.f32.s32 %v1517
    %v1519 = vcvt.f32.s32 %v1513
    %v1520 = vshll.u32 %v1519, 16
    %v1521 = vadd.s32 %v1520, %v1518
    %v1522 = vsel %vm34, %v1500, 2147483647
    %v1523 = vand.u32 %v1522, 65535
    %v1524 = vshra.s32 %v1522, 16
    %v1525 = vcvt.s32.f32 %v1523
    %v1526 = vcvt.s32.f32 %v1524
    %1527 = vmin.xlane.f32.xlu0 %v1526
    %v1528 = vpop.xlane.xlu0 %1527
    %vm1529 = vcmp.eq.f32.partialorder %v1526, %v1528
    %v1530 = vsel %vm1529, %v1525, inf
    %1531 = vmin.xlane.f32.xlu0 %v1530
    %v1532 = vpop.xlane.xlu0 %1531
    %v1533 = vcvt.f32.s32 %v1532
    %v1534 = vcvt.f32.s32 %v1528
    %v1535 = vshll.u32 %v1534, 16
    %v1536 = vadd.s32 %v1535, %v1533
    %v1537 = vsel %vm34, %v1501, 2147483647
    %v1538 = vand.u32 %v1537, 65535
    %v1539 = vshra.s32 %v1537, 16
    %v1540 = vcvt.s32.f32 %v1538
    %v1541 = vcvt.s32.f32 %v1539
    %1542 = vmin.xlane.f32.xlu0 %v1541
    %v1543 = vpop.xlane.xlu0 %1542
    %vm1544 = vcmp.eq.f32.partialorder %v1541, %v1543
    %v1545 = vsel %vm1544, %v1540, inf
    %1546 = vmin.xlane.f32.xlu0 %v1545
    %v1547 = vpop.xlane.xlu0 %1546
    %v1548 = vcvt.f32.s32 %v1547
    %v1549 = vcvt.f32.s32 %v1543
    %v1550 = vshll.u32 %v1549, 16
    %v1551 = vadd.s32 %v1550, %v1548
    %v1552 = vsel %vm34, %v1502, 2147483647
    %v1553 = vand.u32 %v1552, 65535
    %v1554 = vshra.s32 %v1552, 16
    %v1555 = vcvt.s32.f32 %v1553
    %v1556 = vcvt.s32.f32 %v1554
    %1557 = vmin.xlane.f32.xlu0 %v1556
    %v1558 = vpop.xlane.xlu0 %1557
    %vm1559 = vcmp.eq.f32.partialorder %v1556, %v1558
    %v1560 = vsel %vm1559, %v1555, inf
    %1561 = vmin.xlane.f32.xlu0 %v1560
    %v1562 = vpop.xlane.xlu0 %1561
    %v1563 = vcvt.f32.s32 %v1562
    %v1564 = vcvt.f32.s32 %v1558
    %v1565 = vshll.u32 %v1564, 16
    %v1566 = vadd.s32 %v1565, %v1563
    %v1567 = vsel %vm34, %v1503, 2147483647
    %v1568 = vand.u32 %v1567, 65535
    %v1569 = vshra.s32 %v1567, 16
    %v1570 = vcvt.s32.f32 %v1568
    %v1571 = vcvt.s32.f32 %v1569
    %1572 = vmin.xlane.f32.xlu0 %v1571
    %v1573 = vpop.xlane.xlu0 %1572
    %vm1574 = vcmp.eq.f32.partialorder %v1571, %v1573
    %v1575 = vsel %vm1574, %v1570, inf
    %1576 = vmin.xlane.f32.xlu0 %v1575
    %v1577 = vpop.xlane.xlu0 %1576
    %v1578 = vcvt.f32.s32 %v1577
    %v1579 = vcvt.f32.s32 %v1573
    %v1580 = vshll.u32 %v1579, 16
    %v1581 = vadd.s32 %v1580, %v1578
    %v1582 = vsel %vm34, %v1504, 2147483647
    %v1583 = vand.u32 %v1582, 65535
    %v1584 = vshra.s32 %v1582, 16
    %v1585 = vcvt.s32.f32 %v1583
    %v1586 = vcvt.s32.f32 %v1584
    %1587 = vmin.xlane.f32.xlu0 %v1586
    %v1588 = vpop.xlane.xlu0 %1587
    %vm1589 = vcmp.eq.f32.partialorder %v1586, %v1588
    %v1590 = vsel %vm1589, %v1585, inf
    %1591 = vmin.xlane.f32.xlu0 %v1590
    %v1592 = vpop.xlane.xlu0 %1591
    %v1593 = vcvt.f32.s32 %v1592
    %v1594 = vcvt.f32.s32 %v1588
    %v1595 = vshll.u32 %v1594, 16
    %v1596 = vadd.s32 %v1595, %v1593
    %v1597 = vsel %vm34, %v1505, 2147483647
    %v1598 = vand.u32 %v1597, 65535
    %v1599 = vshra.s32 %v1597, 16
    %v1600 = vcvt.s32.f32 %v1598
    %v1601 = vcvt.s32.f32 %v1599
    %1602 = vmin.xlane.f32.xlu0 %v1601
    %v1603 = vpop.xlane.xlu0 %1602
    %vm1604 = vcmp.eq.f32.partialorder %v1601, %v1603
    %v1605 = vsel %vm1604, %v1600, inf
    %1606 = vmin.xlane.f32.xlu0 %v1605
    %v1607 = vpop.xlane.xlu0 %1606
    %v1608 = vcvt.f32.s32 %v1607
    %v1609 = vcvt.f32.s32 %v1603
    %v1610 = vshll.u32 %v1609, 16
    %v1611 = vadd.s32 %v1610, %v1608
    %v1612 = vsel %vm34, %v1506, 2147483647
    %v1613 = vand.u32 %v1612, 65535
    %v1614 = vshra.s32 %v1612, 16
    %v1615 = vcvt.s32.f32 %v1613
    %v1616 = vcvt.s32.f32 %v1614
    %1617 = vmin.xlane.f32.xlu0 %v1616
    %v1618 = vpop.xlane.xlu0 %1617
    %vm1619 = vcmp.eq.f32.partialorder %v1616, %v1618
    %v1620 = vsel %vm1619, %v1615, inf
    %1621 = vmin.xlane.f32.xlu0 %v1620
    %v1622 = vpop.xlane.xlu0 %1621
    %v1623 = vcvt.f32.s32 %v1622
    %v1624 = vcvt.f32.s32 %v1618
    %v1625 = vshll.u32 %v1624, 16
    %v1626 = vadd.s32 %v1625, %v1623
    %vm1627 = vcmp.eq.s32.totalorder %v370, %v1521
    %vm1628 = vcmp.eq.s32.totalorder %v370, %v1536
    %vm1629 = vcmp.eq.s32.totalorder %v370, %v1551
    %vm1630 = vcmp.eq.s32.totalorder %v370, %v1566
    %vm1631 = vcmp.eq.s32.totalorder %v370, %v1581
    %vm1632 = vcmp.eq.s32.totalorder %v370, %v1596
    %vm1633 = vcmp.eq.s32.totalorder %v370, %v1611
    %vm1634 = vcmp.eq.s32.totalorder %v370, %v1626
    %vm1635 = vmor %vm1451, %vm1627
    %vm1636 = vmor %vm1452, %vm1628
    %vm1637 = vmor %vm1453, %vm1629
    %vm1638 = vmor %vm1454, %vm1630
    %vm1639 = vmor %vm1455, %vm1631
    %vm1640 = vmor %vm1456, %vm1632
    %vm1641 = vmor %vm1457, %vm1633
    %vm1642 = vmor %vm1458, %vm1634
    %v1643 = vsel %vm1627, -1e+30, %v1459
    %v1644 = vsel %vm1628, -1e+30, %v1460
    %v1645 = vsel %vm1629, -1e+30, %v1461
    %v1646 = vsel %vm1630, -1e+30, %v1462
    %v1647 = vsel %vm1631, -1e+30, %v1463
    %v1648 = vsel %vm1632, -1e+30, %v1464
    %v1649 = vsel %vm1633, -1e+30, %v1465
    %v1650 = vsel %vm1634, -1e+30, %v1466
    %v1651 = vsel %vm34, %v1643, -inf
    %1652 = vmax.xlane.f32.xlu0 %v1651
    %v1653 = vpop.xlane.xlu0 %1652
    %v1654 = vsel %vm34, %v1644, -inf
    %1655 = vmax.xlane.f32.xlu0 %v1654
    %v1656 = vpop.xlane.xlu0 %1655
    %v1657 = vsel %vm34, %v1645, -inf
    %1658 = vmax.xlane.f32.xlu0 %v1657
    %v1659 = vpop.xlane.xlu0 %1658
    %v1660 = vsel %vm34, %v1646, -inf
    %1661 = vmax.xlane.f32.xlu0 %v1660
    %v1662 = vpop.xlane.xlu0 %1661
    %v1663 = vsel %vm34, %v1647, -inf
    %1664 = vmax.xlane.f32.xlu0 %v1663
    %v1665 = vpop.xlane.xlu0 %1664
    %v1666 = vsel %vm34, %v1648, -inf
    %1667 = vmax.xlane.f32.xlu0 %v1666
    %v1668 = vpop.xlane.xlu0 %1667
    %v1669 = vsel %vm34, %v1649, -inf
    %1670 = vmax.xlane.f32.xlu0 %v1669
    %v1671 = vpop.xlane.xlu0 %1670
    %v1672 = vsel %vm34, %v1650, -inf
    %1673 = vmax.xlane.f32.xlu0 %v1672
    %v1674 = vpop.xlane.xlu0 %1673
    %vm1675 = vcmp.ge.f32.partialorder %v1643, %v1653
    %vm1676 = vcmp.ge.f32.partialorder %v1644, %v1656
    %vm1677 = vcmp.ge.f32.partialorder %v1645, %v1659
    %vm1678 = vcmp.ge.f32.partialorder %v1646, %v1662
    %vm1679 = vcmp.ge.f32.partialorder %v1647, %v1665
    %vm1680 = vcmp.ge.f32.partialorder %v1648, %v1668
    %vm1681 = vcmp.ge.f32.partialorder %v1649, %v1671
    %vm1682 = vcmp.ge.f32.partialorder %v1650, %v1674
    %v1683 = vsel %vm1675, %v370, 64
    %v1684 = vsel %vm1676, %v370, 64
    %v1685 = vsel %vm1677, %v370, 64
    %v1686 = vsel %vm1678, %v370, 64
    %v1687 = vsel %vm1679, %v370, 64
    %v1688 = vsel %vm1680, %v370, 64
    %v1689 = vsel %vm1681, %v370, 64
    %v1690 = vsel %vm1682, %v370, 64
    %v1691 = vsel %vm34, %v1683, 2147483647
    %v1692 = vand.u32 %v1691, 65535
    %v1693 = vshra.s32 %v1691, 16
    %v1694 = vcvt.s32.f32 %v1692
    %v1695 = vcvt.s32.f32 %v1693
    %1696 = vmin.xlane.f32.xlu0 %v1695
    %v1697 = vpop.xlane.xlu0 %1696
    %vm1698 = vcmp.eq.f32.partialorder %v1695, %v1697
    %v1699 = vsel %vm1698, %v1694, inf
    %1700 = vmin.xlane.f32.xlu0 %v1699
    %v1701 = vpop.xlane.xlu0 %1700
    %v1702 = vcvt.f32.s32 %v1701
    %v1703 = vcvt.f32.s32 %v1697
    %v1704 = vshll.u32 %v1703, 16
    %v1705 = vadd.s32 %v1704, %v1702
    %v1706 = vsel %vm34, %v1684, 2147483647
    %v1707 = vand.u32 %v1706, 65535
    %v1708 = vshra.s32 %v1706, 16
    %v1709 = vcvt.s32.f32 %v1707
    %v1710 = vcvt.s32.f32 %v1708
    %1711 = vmin.xlane.f32.xlu0 %v1710
    %v1712 = vpop.xlane.xlu0 %1711
    %vm1713 = vcmp.eq.f32.partialorder %v1710, %v1712
    %v1714 = vsel %vm1713, %v1709, inf
    %1715 = vmin.xlane.f32.xlu0 %v1714
    %v1716 = vpop.xlane.xlu0 %1715
    %v1717 = vcvt.f32.s32 %v1716
    %v1718 = vcvt.f32.s32 %v1712
    %v1719 = vshll.u32 %v1718, 16
    %v1720 = vadd.s32 %v1719, %v1717
    %v1721 = vsel %vm34, %v1685, 2147483647
    %v1722 = vand.u32 %v1721, 65535
    %v1723 = vshra.s32 %v1721, 16
    %v1724 = vcvt.s32.f32 %v1722
    %v1725 = vcvt.s32.f32 %v1723
    %1726 = vmin.xlane.f32.xlu0 %v1725
    %v1727 = vpop.xlane.xlu0 %1726
    %vm1728 = vcmp.eq.f32.partialorder %v1725, %v1727
    %v1729 = vsel %vm1728, %v1724, inf
    %1730 = vmin.xlane.f32.xlu0 %v1729
    %v1731 = vpop.xlane.xlu0 %1730
    %v1732 = vcvt.f32.s32 %v1731
    %v1733 = vcvt.f32.s32 %v1727
    %v1734 = vshll.u32 %v1733, 16
    %v1735 = vadd.s32 %v1734, %v1732
    %v1736 = vsel %vm34, %v1686, 2147483647
    %v1737 = vand.u32 %v1736, 65535
    %v1738 = vshra.s32 %v1736, 16
    %v1739 = vcvt.s32.f32 %v1737
    %v1740 = vcvt.s32.f32 %v1738
    %1741 = vmin.xlane.f32.xlu0 %v1740
    %v1742 = vpop.xlane.xlu0 %1741
    %vm1743 = vcmp.eq.f32.partialorder %v1740, %v1742
    %v1744 = vsel %vm1743, %v1739, inf
    %1745 = vmin.xlane.f32.xlu0 %v1744
    %v1746 = vpop.xlane.xlu0 %1745
    %v1747 = vcvt.f32.s32 %v1746
    %v1748 = vcvt.f32.s32 %v1742
    %v1749 = vshll.u32 %v1748, 16
    %v1750 = vadd.s32 %v1749, %v1747
    %v1751 = vsel %vm34, %v1687, 2147483647
    %v1752 = vand.u32 %v1751, 65535
    %v1753 = vshra.s32 %v1751, 16
    %v1754 = vcvt.s32.f32 %v1752
    %v1755 = vcvt.s32.f32 %v1753
    %1756 = vmin.xlane.f32.xlu0 %v1755
    %v1757 = vpop.xlane.xlu0 %1756
    %vm1758 = vcmp.eq.f32.partialorder %v1755, %v1757
    %v1759 = vsel %vm1758, %v1754, inf
    %1760 = vmin.xlane.f32.xlu0 %v1759
    %v1761 = vpop.xlane.xlu0 %1760
    %v1762 = vcvt.f32.s32 %v1761
    %v1763 = vcvt.f32.s32 %v1757
    %v1764 = vshll.u32 %v1763, 16
    %v1765 = vadd.s32 %v1764, %v1762
    %v1766 = vsel %vm34, %v1688, 2147483647
    %v1767 = vand.u32 %v1766, 65535
    %v1768 = vshra.s32 %v1766, 16
    %v1769 = vcvt.s32.f32 %v1767
    %v1770 = vcvt.s32.f32 %v1768
    %1771 = vmin.xlane.f32.xlu0 %v1770
    %v1772 = vpop.xlane.xlu0 %1771
    %vm1773 = vcmp.eq.f32.partialorder %v1770, %v1772
    %v1774 = vsel %vm1773, %v1769, inf
    %1775 = vmin.xlane.f32.xlu0 %v1774
    %v1776 = vpop.xlane.xlu0 %1775
    %v1777 = vcvt.f32.s32 %v1776
    %v1778 = vcvt.f32.s32 %v1772
    %v1779 = vshll.u32 %v1778, 16
    %v1780 = vadd.s32 %v1779, %v1777
    %v1781 = vsel %vm34, %v1689, 2147483647
    %v1782 = vand.u32 %v1781, 65535
    %v1783 = vshra.s32 %v1781, 16
    %v1784 = vcvt.s32.f32 %v1782
    %v1785 = vcvt.s32.f32 %v1783
    %1786 = vmin.xlane.f32.xlu0 %v1785
    %v1787 = vpop.xlane.xlu0 %1786
    %vm1788 = vcmp.eq.f32.partialorder %v1785, %v1787
    %v1789 = vsel %vm1788, %v1784, inf
    %1790 = vmin.xlane.f32.xlu0 %v1789
    %v1791 = vpop.xlane.xlu0 %1790
    %v1792 = vcvt.f32.s32 %v1791
    %v1793 = vcvt.f32.s32 %v1787
    %v1794 = vshll.u32 %v1793, 16
    %v1795 = vadd.s32 %v1794, %v1792
    %v1796 = vsel %vm34, %v1690, 2147483647
    %v1797 = vand.u32 %v1796, 65535
    %v1798 = vshra.s32 %v1796, 16
    %v1799 = vcvt.s32.f32 %v1797
    %v1800 = vcvt.s32.f32 %v1798
    %1801 = vmin.xlane.f32.xlu0 %v1800
    %v1802 = vpop.xlane.xlu0 %1801
    %vm1803 = vcmp.eq.f32.partialorder %v1800, %v1802
    %v1804 = vsel %vm1803, %v1799, inf
    %1805 = vmin.xlane.f32.xlu0 %v1804
    %v1806 = vpop.xlane.xlu0 %1805
    %v1807 = vcvt.f32.s32 %v1806
    %v1808 = vcvt.f32.s32 %v1802
    %v1809 = vshll.u32 %v1808, 16
    %v1810 = vadd.s32 %v1809, %v1807
    %vm1811 = vcmp.eq.s32.totalorder %v370, %v1705
    %vm1812 = vcmp.eq.s32.totalorder %v370, %v1720
    %vm1813 = vcmp.eq.s32.totalorder %v370, %v1735
    %vm1814 = vcmp.eq.s32.totalorder %v370, %v1750
    %vm1815 = vcmp.eq.s32.totalorder %v370, %v1765
    %vm1816 = vcmp.eq.s32.totalorder %v370, %v1780
    %vm1817 = vcmp.eq.s32.totalorder %v370, %v1795
    %vm1818 = vcmp.eq.s32.totalorder %v370, %v1810
    %vm1819 = vmor %vm1635, %vm1811
    %vm1820 = vmor %vm1636, %vm1812
    %vm1821 = vmor %vm1637, %vm1813
    %vm1822 = vmor %vm1638, %vm1814
    %vm1823 = vmor %vm1639, %vm1815
    %vm1824 = vmor %vm1640, %vm1816
    %vm1825 = vmor %vm1641, %vm1817
    %vm1826 = vmor %vm1642, %vm1818
    %v1827 = vsel %vm1819, %v346, -1e+30
    %v1828 = vsel %vm1820, %v349, -1e+30
    %v1829 = vsel %vm1821, %v352, -1e+30
    %v1830 = vsel %vm1822, %v355, -1e+30
    %v1831 = vsel %vm1823, %v358, -1e+30
    %v1832 = vsel %vm1824, %v361, -1e+30
    %v1833 = vsel %vm1825, %v364, -1e+30
    %v1834 = vsel %vm1826, %v367, -1e+30
    %v1835 = vsel %vm34, %v1827, -inf
    %1836 = vmax.xlane.f32.xlu0 %v1835
    %v1837 = vpop.xlane.xlu0 %1836
    %v1838 = vsel %vm34, %v1828, -inf
    %1839 = vmax.xlane.f32.xlu0 %v1838
    %v1840 = vpop.xlane.xlu0 %1839
    %v1841 = vsel %vm34, %v1829, -inf
    %1842 = vmax.xlane.f32.xlu0 %v1841
    %v1843 = vpop.xlane.xlu0 %1842
    %v1844 = vsel %vm34, %v1830, -inf
    %1845 = vmax.xlane.f32.xlu0 %v1844
    %v1846 = vpop.xlane.xlu0 %1845
    %v1847 = vsel %vm34, %v1831, -inf
    %1848 = vmax.xlane.f32.xlu0 %v1847
    %v1849 = vpop.xlane.xlu0 %1848
    %v1850 = vsel %vm34, %v1832, -inf
    %1851 = vmax.xlane.f32.xlu0 %v1850
    %v1852 = vpop.xlane.xlu0 %1851
    %v1853 = vsel %vm34, %v1833, -inf
    %1854 = vmax.xlane.f32.xlu0 %v1853
    %v1855 = vpop.xlane.xlu0 %1854
    %v1856 = vsel %vm34, %v1834, -inf
    %1857 = vmax.xlane.f32.xlu0 %v1856
    %v1858 = vpop.xlane.xlu0 %1857
    %v1859 = vsub.f32 %v1827, %v1837
    %v1860 = vsub.f32 %v1828, %v1840
    %v1861 = vsub.f32 %v1829, %v1843
    %v1862 = vsub.f32 %v1830, %v1846
    %v1863 = vsub.f32 %v1831, %v1849
    %v1864 = vsub.f32 %v1832, %v1852
    %v1865 = vsub.f32 %v1833, %v1855
    %v1866 = vsub.f32 %v1834, %v1858
    %v1867 = vmul.f32 %v1859, 1.442695
    %v1868 = vpow.pop %v1867
    %v1869 = vmul.f32 %v1860, 1.442695
    %v1870 = vpow.pop %v1869
    %v1871 = vmul.f32 %v1861, 1.442695
    %v1872 = vpow.pop %v1871
    %v1873 = vmul.f32 %v1862, 1.442695
    %v1874 = vpow.pop %v1873
    %v1875 = vmul.f32 %v1863, 1.442695
    %v1876 = vpow.pop %v1875
    %v1877 = vmul.f32 %v1864, 1.442695
    %v1878 = vpow.pop %v1877
    %v1879 = vmul.f32 %v1865, 1.442695
    %v1880 = vpow.pop %v1879
    %v1881 = vmul.f32 %v1866, 1.442695
    %v1882 = vpow.pop %v1881
    %v1883 = vsel %vm34, %v1868, 0.0
    %1884 = vadd.xlane.f32.xlu0 %v1883
    %v1885 = vpop.xlane.xlu0 %1884
    %v1886 = vsel %vm34, %v1870, 0.0
    %1887 = vadd.xlane.f32.xlu0 %v1886
    %v1888 = vpop.xlane.xlu0 %1887
    %v1889 = vsel %vm34, %v1872, 0.0
    %1890 = vadd.xlane.f32.xlu0 %v1889
    %v1891 = vpop.xlane.xlu0 %1890
    %v1892 = vsel %vm34, %v1874, 0.0
    %1893 = vadd.xlane.f32.xlu0 %v1892
    %v1894 = vpop.xlane.xlu0 %1893
    %v1895 = vsel %vm34, %v1876, 0.0
    %1896 = vadd.xlane.f32.xlu0 %v1895
    %v1897 = vpop.xlane.xlu0 %1896
    %v1898 = vsel %vm34, %v1878, 0.0
    %1899 = vadd.xlane.f32.xlu0 %v1898
    %v1900 = vpop.xlane.xlu0 %1899
    %v1901 = vsel %vm34, %v1880, 0.0
    %1902 = vadd.xlane.f32.xlu0 %v1901
    %v1903 = vpop.xlane.xlu0 %1902
    %v1904 = vsel %vm34, %v1882, 0.0
    %1905 = vadd.xlane.f32.xlu0 %v1904
    %v1906 = vpop.xlane.xlu0 %1905
    %1907 = vrot.lane.b32.xlu0 %v249, 64
    %v1908 = vpop.permute.xlu0 %1907
    %1909 = vrot.lane.b32.xlu0 %v252, 64
    %v1910 = vpop.permute.xlu0 %1909
    %1911 = vrot.lane.b32.xlu0 %v255, 64
    %v1912 = vpop.permute.xlu0 %1911
    %1913 = vrot.lane.b32.xlu0 %v258, 64
    %v1914 = vpop.permute.xlu0 %1913
    %1915 = vrot.lane.b32.xlu0 %v261, 64
    %v1916 = vpop.permute.xlu0 %1915
    %1917 = vrot.lane.b32.xlu0 %v264, 64
    %v1918 = vpop.permute.xlu0 %1917
    %1919 = vrot.lane.b32.xlu0 %v267, 64
    %v1920 = vpop.permute.xlu0 %1919
    %1921 = vrot.lane.b32.xlu0 %v270, 64
    %v1922 = vpop.permute.xlu0 %1921
    %v1932 = vsel %vm34, %v1868, 0
    %v1935 = vsel %vm34, %v1870, 0
    %v1938 = vsel %vm34, %v1872, 0
    %v1941 = vsel %vm34, %v1874, 0
    %v1944 = vsel %vm34, %v1876, 0
    %v1947 = vsel %vm34, %v1878, 0
    %v1950 = vsel %vm34, %v1880, 0
    %v1953 = vsel %vm34, %v1882, 0
    %1955 = vmatpush.msra.mxu0 0.0
    %1956 = vmatpush.msra.mxu0 0.0
    %1957 = vmatpush.msra.mxu0 0.0
    %1958 = vmatpush.msra.mxu0 0.0
    %1959 = vmatpush.msra.mxu0 0.0
    %1960 = vmatpush.msra.mxu0 0.0
    %1961 = vmatpush.msra.mxu0 0.0
    %1962 = vmatpush.msra.mxu0 0.0
    %1963 = vmatpush.msra.mxu0 %v1922
    %1964 = vmatpush.msra.mxu0 %v1920
    %1965 = vmatpush.msra.mxu0 %v1918
    %1966 = vmatpush.msra.mxu0 %v1916
    %1967 = vmatpush.msra.mxu0 %v1914
    %1968 = vmatpush.msra.mxu0 %v1912
    %1969 = vmatpush.msra.mxu0 %v1910
    %1970 = vmatpush.msra.mxu0 %v1908
    %1971 = vmatmul.f32.gmra.mxu0 %v1932
    %v1972 = vpop.f32.mrf.mxu0
    %v1973 = vadd.f32 0.0, %v1972
    %1974 = vmatmul.f32.gmra.mxu0 %v1935
    %v1975 = vpop.f32.mrf.mxu0
    %v1976 = vadd.f32 0.0, %v1975
    %1977 = vmatmul.f32.gmra.mxu0 %v1938
    %v1978 = vpop.f32.mrf.mxu0
    %v1979 = vadd.f32 0.0, %v1978
    %1980 = vmatmul.f32.gmra.mxu0 %v1941
    %v1981 = vpop.f32.mrf.mxu0
    %v1982 = vadd.f32 0.0, %v1981
    %1983 = vmatmul.f32.gmra.mxu0 %v1944
    %v1984 = vpop.f32.mrf.mxu0
    %v1985 = vadd.f32 0.0, %v1984
    %1986 = vmatmul.f32.gmra.mxu0 %v1947
    %v1987 = vpop.f32.mrf.mxu0
    %v1988 = vadd.f32 0.0, %v1987
    %1989 = vmatmul.f32.gmra.mxu0 %v1950
    %v1990 = vpop.f32.mrf.mxu0
    %v1991 = vadd.f32 0.0, %v1990
    %1992 = vmatmul.f32.gmra.mxu0 %v1953
    %v1993 = vpop.f32.mrf.mxu0
    %v1994 = vadd.f32 0.0, %v1993
    %1995 = vdwg.mxu0
    %v1996 = vrcp.pop %v1885
    %v1997 = vmul.f32 %v1885, %v1996
    %v1998 = vsub.f32 1.0, %v1997
    %v1999 = vmul.f32 %v1996, %v1998
    %v2000 = vadd.f32 %v1996, %v1999
    %vm2001 = vweird.f32 %v1885
    %vm2002 = vweird.f32 %v1996
    %vm2003 = vmor %vm2001, %vm2002
    %v2004 = vsel %vm2003, %v1996, %v2000
    %v2005 = vand.u32 2147483647, %v1885
    %vm2006 = vcmp.eq.f32.partialorder %v2005, 8.507059e+37
    %v2007 = vand.u32 %v1885, 2147483648
    %v2008 = vor.u32 1.1754944e-38, %v2007
    %v2009 = vsel %vm2006, %v2008, %v2004
    %v2010 = vrcp.pop %v1888
    %v2011 = vmul.f32 %v1888, %v2010
    %v2012 = vsub.f32 1.0, %v2011
    %v2013 = vmul.f32 %v2010, %v2012
    %v2014 = vadd.f32 %v2010, %v2013
    %vm2015 = vweird.f32 %v1888
    %vm2016 = vweird.f32 %v2010
    %vm2017 = vmor %vm2015, %vm2016
    %v2018 = vsel %vm2017, %v2010, %v2014
    %v2019 = vand.u32 2147483647, %v1888
    %vm2020 = vcmp.eq.f32.partialorder %v2019, 8.507059e+37
    %v2021 = vand.u32 %v1888, 2147483648
    %v2022 = vor.u32 1.1754944e-38, %v2021
    %v2023 = vsel %vm2020, %v2022, %v2018
    %v2024 = vrcp.pop %v1891
    %v2025 = vmul.f32 %v1891, %v2024
    %v2026 = vsub.f32 1.0, %v2025
    %v2027 = vmul.f32 %v2024, %v2026
    %v2028 = vadd.f32 %v2024, %v2027
    %vm2029 = vweird.f32 %v1891
    %vm2030 = vweird.f32 %v2024
    %vm2031 = vmor %vm2029, %vm2030
    %v2032 = vsel %vm2031, %v2024, %v2028
    %v2033 = vand.u32 2147483647, %v1891
    %vm2034 = vcmp.eq.f32.partialorder %v2033, 8.507059e+37
    %v2035 = vand.u32 %v1891, 2147483648
    %v2036 = vor.u32 1.1754944e-38, %v2035
    %v2037 = vsel %vm2034, %v2036, %v2032
    %v2038 = vrcp.pop %v1894
    %v2039 = vmul.f32 %v1894, %v2038
    %v2040 = vsub.f32 1.0, %v2039
    %v2041 = vmul.f32 %v2038, %v2040
    %v2042 = vadd.f32 %v2038, %v2041
    %vm2043 = vweird.f32 %v1894
    %vm2044 = vweird.f32 %v2038
    %vm2045 = vmor %vm2043, %vm2044
    %v2046 = vsel %vm2045, %v2038, %v2042
    %v2047 = vand.u32 2147483647, %v1894
    %vm2048 = vcmp.eq.f32.partialorder %v2047, 8.507059e+37
    %v2049 = vand.u32 %v1894, 2147483648
    %v2050 = vor.u32 1.1754944e-38, %v2049
    %v2051 = vsel %vm2048, %v2050, %v2046
    %v2052 = vrcp.pop %v1897
    %v2053 = vmul.f32 %v1897, %v2052
    %v2054 = vsub.f32 1.0, %v2053
    %v2055 = vmul.f32 %v2052, %v2054
    %v2056 = vadd.f32 %v2052, %v2055
    %vm2057 = vweird.f32 %v1897
    %vm2058 = vweird.f32 %v2052
    %vm2059 = vmor %vm2057, %vm2058
    %v2060 = vsel %vm2059, %v2052, %v2056
    %v2061 = vand.u32 2147483647, %v1897
    %vm2062 = vcmp.eq.f32.partialorder %v2061, 8.507059e+37
    %v2063 = vand.u32 %v1897, 2147483648
    %v2064 = vor.u32 1.1754944e-38, %v2063
    %v2065 = vsel %vm2062, %v2064, %v2060
    %v2066 = vrcp.pop %v1900
    %v2067 = vmul.f32 %v1900, %v2066
    %v2068 = vsub.f32 1.0, %v2067
    %v2069 = vmul.f32 %v2066, %v2068
    %v2070 = vadd.f32 %v2066, %v2069
    %vm2071 = vweird.f32 %v1900
    %vm2072 = vweird.f32 %v2066
    %vm2073 = vmor %vm2071, %vm2072
    %v2074 = vsel %vm2073, %v2066, %v2070
    %v2075 = vand.u32 2147483647, %v1900
    %vm2076 = vcmp.eq.f32.partialorder %v2075, 8.507059e+37
    %v2077 = vand.u32 %v1900, 2147483648
    %v2078 = vor.u32 1.1754944e-38, %v2077
    %v2079 = vsel %vm2076, %v2078, %v2074
    %v2080 = vrcp.pop %v1903
    %v2081 = vmul.f32 %v1903, %v2080
    %v2082 = vsub.f32 1.0, %v2081
    %v2083 = vmul.f32 %v2080, %v2082
    %v2084 = vadd.f32 %v2080, %v2083
    %vm2085 = vweird.f32 %v1903
    %vm2086 = vweird.f32 %v2080
    %vm2087 = vmor %vm2085, %vm2086
    %v2088 = vsel %vm2087, %v2080, %v2084
    %v2089 = vand.u32 2147483647, %v1903
    %vm2090 = vcmp.eq.f32.partialorder %v2089, 8.507059e+37
    %v2091 = vand.u32 %v1903, 2147483648
    %v2092 = vor.u32 1.1754944e-38, %v2091
    %v2093 = vsel %vm2090, %v2092, %v2088
    %v2094 = vrcp.pop %v1906
    %v2095 = vmul.f32 %v1906, %v2094
    %v2096 = vsub.f32 1.0, %v2095
    %v2097 = vmul.f32 %v2094, %v2096
    %v2098 = vadd.f32 %v2094, %v2097
    %vm2099 = vweird.f32 %v1906
    %vm2100 = vweird.f32 %v2094
    %vm2101 = vmor %vm2099, %vm2100
    %v2102 = vsel %vm2101, %v2094, %v2098
    %v2103 = vand.u32 2147483647, %v1906
    %vm2104 = vcmp.eq.f32.partialorder %v2103, 8.507059e+37
    %v2105 = vand.u32 %v1906, 2147483648
    %v2106 = vor.u32 1.1754944e-38, %v2105
    %v2107 = vsel %vm2104, %v2106, %v2102
    %v2108 = vmul.f32 %v1973, %v2009
    %v2109 = vmul.f32 %v1976, %v2023
    %v2110 = vmul.f32 %v1979, %v2037
    %v2111 = vmul.f32 %v1982, %v2051
    %v2112 = vmul.f32 %v1985, %v2065
    %v2113 = vmul.f32 %v1988, %v2079
    %v2114 = vmul.f32 %v1991, %v2093
    %v2115 = vmul.f32 %v1994, %v2107
    %v2116 = vmul.f32 %v118, 0.1
    %v2117 = vmul.f32 %v121, 0.1
    %v2118 = vmul.f32 %v124, 0.1
    %v2119 = vmul.f32 %v127, 0.1
    %v2120 = vmul.f32 %v130, 0.1
    %v2121 = vmul.f32 %v133, 0.1
    %v2122 = vmul.f32 %v136, 0.1
    %v2123 = vmul.f32 %v139, 0.1
    %v2124 = vadd.f32 %v2108, %v2116
    %v2125 = vadd.f32 %v2109, %v2117
    %v2126 = vadd.f32 %v2110, %v2118
    %v2127 = vadd.f32 %v2111, %v2119
    %v2128 = vadd.f32 %v2112, %v2120
    %v2129 = vadd.f32 %v2113, %v2121
    %v2130 = vadd.f32 %v2114, %v2122
    %v2131 = vadd.f32 %v2115, %v2123
    %2136 = vrot.lane.b32.xlu0 %v223, 32
    %v2137 = vpop.permute.xlu0 %2136
    %2138 = vrot.lane.b32.xlu0 %v224, 32
    %v2139 = vpop.permute.xlu0 %2138
    %2140 = vrot.lane.b32.xlu0 %v225, 32
    %v2141 = vpop.permute.xlu0 %2140
    %2142 = vrot.lane.b32.xlu0 %v226, 32
    %v2143 = vpop.permute.xlu0 %2142
    %2148 = vrot.lane.b32.xlu0 %v229, 32
    %v2149 = vpop.permute.xlu0 %2148
    %v2152 = vsel %vm157, %v149, 0
    %v2155 = vsel %vm157, %v150, 0
    %v2158 = vsel %vm157, %v151, 0
    %v2161 = vsel %vm157, %v152, 0
    %v2164 = vsel %vm157, %v153, 0
    %v2167 = vsel %vm157, %v154, 0
    %v2170 = vsel %vm157, %v155, 0
    %v2173 = vsel %vm157, %v156, 0
    %v2176 = vsel %vm157, %v2124, 0
    %v2179 = vsel %vm157, %v2125, 0
    %v2182 = vsel %vm157, %v2126, 0
    %v2185 = vsel %vm157, %v2127, 0
    %v2188 = vsel %vm157, %v2128, 0
    %v2191 = vsel %vm157, %v2129, 0
    %v2194 = vsel %vm157, %v2130, 0
    %v2197 = vsel %vm157, %v2131, 0
    %2199 = vmatpush.msra.mxu0 0.0
    %2200 = vmatpush.msra.mxu0 0.0
    %2201 = vmatpush.msra.mxu0 0.0
    %2202 = vmatpush.msra.mxu0 0.0
    %2203 = vmatpush.msra.mxu0 0.0
    %2204 = vmatpush.msra.mxu0 0.0
    %2205 = vmatpush.msra.mxu0 0.0
    %2206 = vmatpush.msra.mxu0 0.0
    %2207 = vmatpush.msra.mxu0 0.0
    %2208 = vmatpush.msra.mxu0 0.0
    %2209 = vmatpush.msra.mxu0 0.0
    %2210 = vmatpush.msra.mxu0 0.0
    %2211 = vmatpush.msra.mxu0 %v2143
    %2212 = vmatpush.msra.mxu0 %v2141
    %2213 = vmatpush.msra.mxu0 %v2139
    %2214 = vmatpush.msra.mxu0 %v2137
    %2215 = vmatmul.f32.gmra.mxu0 %v2152
    %v2216 = vpop.f32.mrf.mxu0
    %v2217 = vadd.f32 %v2149, %v2216
    %2218 = vmatmul.f32.gmra.mxu0 %v2155
    %v2219 = vpop.f32.mrf.mxu0
    %v2220 = vadd.f32 %v2149, %v2219
    %2221 = vmatmul.f32.gmra.mxu0 %v2158
    %v2222 = vpop.f32.mrf.mxu0
    %v2223 = vadd.f32 %v2149, %v2222
    %2224 = vmatmul.f32.gmra.mxu0 %v2161
    %v2225 = vpop.f32.mrf.mxu0
    %v2226 = vadd.f32 %v2149, %v2225
    %2227 = vmatmul.f32.gmra.mxu0 %v2164
    %v2228 = vpop.f32.mrf.mxu0
    %v2229 = vadd.f32 %v2149, %v2228
    %2230 = vmatmul.f32.gmra.mxu0 %v2167
    %v2231 = vpop.f32.mrf.mxu0
    %v2232 = vadd.f32 %v2149, %v2231
    %2233 = vmatmul.f32.gmra.mxu0 %v2170
    %v2234 = vpop.f32.mrf.mxu0
    %v2235 = vadd.f32 %v2149, %v2234
    %2236 = vmatmul.f32.gmra.mxu0 %v2173
    %v2237 = vpop.f32.mrf.mxu0
    %v2238 = vadd.f32 %v2149, %v2237
    %2239 = vmatmul.f32.gmra.mxu0 %v2176
    %v2240 = vpop.f32.mrf.mxu0
    %v2241 = vadd.f32 %v2149, %v2240
    %2242 = vmatmul.f32.gmra.mxu0 %v2179
    %v2243 = vpop.f32.mrf.mxu0
    %v2244 = vadd.f32 %v2149, %v2243
    %2245 = vmatmul.f32.gmra.mxu0 %v2182
    %v2246 = vpop.f32.mrf.mxu0
    %v2247 = vadd.f32 %v2149, %v2246
    %2248 = vmatmul.f32.gmra.mxu0 %v2185
    %v2249 = vpop.f32.mrf.mxu0
    %v2250 = vadd.f32 %v2149, %v2249
    %2251 = vmatmul.f32.gmra.mxu0 %v2188
    %v2252 = vpop.f32.mrf.mxu0
    %v2253 = vadd.f32 %v2149, %v2252
    %2254 = vmatmul.f32.gmra.mxu0 %v2191
    %v2255 = vpop.f32.mrf.mxu0
    %v2256 = vadd.f32 %v2149, %v2255
    %2257 = vmatmul.f32.gmra.mxu0 %v2194
    %v2258 = vpop.f32.mrf.mxu0
    %v2259 = vadd.f32 %v2149, %v2258
    %2260 = vmatmul.f32.gmra.mxu0 %v2197
    %v2261 = vpop.f32.mrf.mxu0
    %v2262 = vadd.f32 %v2149, %v2261
    %2263 = vdwg.mxu0
    %v2264 = vtanh.pop %v2217
    %v2265 = vtanh.pop %v2220
    %v2266 = vtanh.pop %v2223
    %v2267 = vtanh.pop %v2226
    %v2268 = vtanh.pop %v2229
    %v2269 = vtanh.pop %v2232
    %v2270 = vtanh.pop %v2235
    %v2271 = vtanh.pop %v2238
    %v2272 = vtanh.pop %v2241
    %v2273 = vtanh.pop %v2244
    %v2274 = vtanh.pop %v2247
    %v2275 = vtanh.pop %v2250
    %v2276 = vtanh.pop %v2253
    %v2277 = vtanh.pop %v2256
    %v2278 = vtanh.pop %v2259
    %v2279 = vtanh.pop %v2262
    %v2280 = vsel %vm157, %v2264, -inf
    %v2281 = vsel %vm157, %v2265, -inf
    %v2282 = vsel %vm157, %v2266, -inf
    %v2283 = vsel %vm157, %v2267, -inf
    %v2284 = vsel %vm157, %v2268, -inf
    %v2285 = vmax.f32 %v2280, %v2284
    %v2286 = vsel %vm157, %v2269, -inf
    %v2287 = vmax.f32 %v2281, %v2286
    %v2288 = vsel %vm157, %v2270, -inf
    %v2289 = vmax.f32 %v2282, %v2288
    %v2290 = vsel %vm157, %v2271, -inf
    %v2291 = vmax.f32 %v2283, %v2290
    %v2292 = vmax.f32 %v2285, %v2287
    %v2293 = vmax.f32 %v2289, %v2291
    %v2294 = vmax.f32 %v2292, %v2293
    %v2295 = vrot.slane %v2294, 4
    %v2296 = vmax.f32 %v2294, %v2295
    %v2297 = vrot.slane %v2296, 2
    %v2298 = vmax.f32 %v2296, %v2297
    %v2299 = vrot.slane %v2298, 1
    %v2300 = vmax.f32 %v2298, %v2299
    %v2301 = vsub.f32 %v2264, %v2300
    %v2302 = vsub.f32 %v2265, %v2300
    %v2303 = vsub.f32 %v2266, %v2300
    %v2304 = vsub.f32 %v2267, %v2300
    %v2305 = vsub.f32 %v2268, %v2300
    %v2306 = vsub.f32 %v2269, %v2300
    %v2307 = vsub.f32 %v2270, %v2300
    %v2308 = vsub.f32 %v2271, %v2300
    %v2309 = vmul.f32 %v2301, 1.442695
    %v2310 = vpow.pop %v2309
    %v2311 = vmul.f32 %v2302, 1.442695
    %v2312 = vpow.pop %v2311
    %v2313 = vmul.f32 %v2303, 1.442695
    %v2314 = vpow.pop %v2313
    %v2315 = vmul.f32 %v2304, 1.442695
    %v2316 = vpow.pop %v2315
    %v2317 = vmul.f32 %v2305, 1.442695
    %v2318 = vpow.pop %v2317
    %v2319 = vmul.f32 %v2306, 1.442695
    %v2320 = vpow.pop %v2319
    %v2321 = vmul.f32 %v2307, 1.442695
    %v2322 = vpow.pop %v2321
    %v2323 = vmul.f32 %v2308, 1.442695
    %v2324 = vpow.pop %v2323
    %v2325 = vsel %vm157, %v2310, 0.0
    %v2326 = vsel %vm157, %v2312, 0.0
    %v2327 = vadd.f32 %v2325, %v2326
    %v2328 = vsel %vm157, %v2314, 0.0
    %v2329 = vadd.f32 %v2327, %v2328
    %v2330 = vsel %vm157, %v2316, 0.0
    %v2331 = vadd.f32 %v2329, %v2330
    %v2332 = vsel %vm157, %v2318, 0.0
    %v2333 = vadd.f32 %v2331, %v2332
    %v2334 = vsel %vm157, %v2320, 0.0
    %v2335 = vadd.f32 %v2333, %v2334
    %v2336 = vsel %vm157, %v2322, 0.0
    %v2337 = vadd.f32 %v2335, %v2336
    %v2338 = vsel %vm157, %v2324, 0.0
    %v2339 = vadd.f32 %v2337, %v2338
    %v2340 = vrot.slane %v2339, 4
    %v2341 = vadd.f32 %v2339, %v2340
    %v2342 = vrot.slane %v2341, 2
    %v2343 = vadd.f32 %v2341, %v2342
    %v2344 = vrot.slane %v2343, 1
    %v2345 = vadd.f32 %v2343, %v2344
    %v2346 = vrcp.pop %v2345
    %v2347 = vmul.f32 %v2345, %v2346
    %v2348 = vsub.f32 1.0, %v2347
    %v2349 = vmul.f32 %v2346, %v2348
    %v2350 = vadd.f32 %v2346, %v2349
    %vm2351 = vweird.f32 %v2345
    %vm2352 = vweird.f32 %v2346
    %vm2353 = vmor %vm2351, %vm2352
    %v2354 = vsel %vm2353, %v2346, %v2350
    %v2355 = vand.u32 2147483647, %v2345
    %vm2356 = vcmp.eq.f32.partialorder %v2355, 8.507059e+37
    %v2357 = vand.u32 %v2345, 2147483648
    %v2358 = vor.u32 1.1754944e-38, %v2357
    %v2359 = vsel %vm2356, %v2358, %v2354
    %v2360 = vmul.f32 %v2310, %v2359
    %v2361 = vmul.f32 %v2312, %v2359
    %v2362 = vmul.f32 %v2314, %v2359
    %v2363 = vmul.f32 %v2316, %v2359
    %v2364 = vmul.f32 %v2318, %v2359
    %v2365 = vmul.f32 %v2320, %v2359
    %v2366 = vmul.f32 %v2322, %v2359
    %v2367 = vmul.f32 %v2324, %v2359
    %v2368 = vmul.f32 %v2360, %v149
    %v2369 = vmul.f32 %v2361, %v150
    %v2370 = vmul.f32 %v2362, %v151
    %v2371 = vmul.f32 %v2363, %v152
    %v2372 = vmul.f32 %v2364, %v153
    %v2373 = vmul.f32 %v2365, %v154
    %v2374 = vmul.f32 %v2366, %v155
    %v2375 = vmul.f32 %v2367, %v156
    %v2376 = vsel %vm157, %v2272, -inf
    %v2377 = vsel %vm157, %v2273, -inf
    %v2378 = vsel %vm157, %v2274, -inf
    %v2379 = vsel %vm157, %v2275, -inf
    %v2380 = vsel %vm157, %v2276, -inf
    %v2381 = vmax.f32 %v2376, %v2380
    %v2382 = vsel %vm157, %v2277, -inf
    %v2383 = vmax.f32 %v2377, %v2382
    %v2384 = vsel %vm157, %v2278, -inf
    %v2385 = vmax.f32 %v2378, %v2384
    %v2386 = vsel %vm157, %v2279, -inf
    %v2387 = vmax.f32 %v2379, %v2386
    %v2388 = vmax.f32 %v2381, %v2383
    %v2389 = vmax.f32 %v2385, %v2387
    %v2390 = vmax.f32 %v2388, %v2389
    %v2391 = vrot.slane %v2390, 4
    %v2392 = vmax.f32 %v2390, %v2391
    %v2393 = vrot.slane %v2392, 2
    %v2394 = vmax.f32 %v2392, %v2393
    %v2395 = vrot.slane %v2394, 1
    %v2396 = vmax.f32 %v2394, %v2395
    %v2397 = vsub.f32 %v2272, %v2396
    %v2398 = vsub.f32 %v2273, %v2396
    %v2399 = vsub.f32 %v2274, %v2396
    %v2400 = vsub.f32 %v2275, %v2396
    %v2401 = vsub.f32 %v2276, %v2396
    %v2402 = vsub.f32 %v2277, %v2396
    %v2403 = vsub.f32 %v2278, %v2396
    %v2404 = vsub.f32 %v2279, %v2396
    %v2405 = vmul.f32 %v2397, 1.442695
    %v2406 = vpow.pop %v2405
    %v2407 = vmul.f32 %v2398, 1.442695
    %v2408 = vpow.pop %v2407
    %v2409 = vmul.f32 %v2399, 1.442695
    %v2410 = vpow.pop %v2409
    %v2411 = vmul.f32 %v2400, 1.442695
    %v2412 = vpow.pop %v2411
    %v2413 = vmul.f32 %v2401, 1.442695
    %v2414 = vpow.pop %v2413
    %v2415 = vmul.f32 %v2402, 1.442695
    %v2416 = vpow.pop %v2415
    %v2417 = vmul.f32 %v2403, 1.442695
    %v2418 = vpow.pop %v2417
    %v2419 = vmul.f32 %v2404, 1.442695
    %v2420 = vpow.pop %v2419
    %v2421 = vsel %vm157, %v2406, 0.0
    %v2422 = vsel %vm157, %v2408, 0.0
    %v2423 = vadd.f32 %v2421, %v2422
    %v2424 = vsel %vm157, %v2410, 0.0
    %v2425 = vadd.f32 %v2423, %v2424
    %v2426 = vsel %vm157, %v2412, 0.0
    %v2427 = vadd.f32 %v2425, %v2426
    %v2428 = vsel %vm157, %v2414, 0.0
    %v2429 = vadd.f32 %v2427, %v2428
    %v2430 = vsel %vm157, %v2416, 0.0
    %v2431 = vadd.f32 %v2429, %v2430
    %v2432 = vsel %vm157, %v2418, 0.0
    %v2433 = vadd.f32 %v2431, %v2432
    %v2434 = vsel %vm157, %v2420, 0.0
    %v2435 = vadd.f32 %v2433, %v2434
    %v2436 = vrot.slane %v2435, 4
    %v2437 = vadd.f32 %v2435, %v2436
    %v2438 = vrot.slane %v2437, 2
    %v2439 = vadd.f32 %v2437, %v2438
    %v2440 = vrot.slane %v2439, 1
    %v2441 = vadd.f32 %v2439, %v2440
    %v2442 = vrcp.pop %v2441
    %v2443 = vmul.f32 %v2441, %v2442
    %v2444 = vsub.f32 1.0, %v2443
    %v2445 = vmul.f32 %v2442, %v2444
    %v2446 = vadd.f32 %v2442, %v2445
    %vm2447 = vweird.f32 %v2441
    %vm2448 = vweird.f32 %v2442
    %vm2449 = vmor %vm2447, %vm2448
    %v2450 = vsel %vm2449, %v2442, %v2446
    %v2451 = vand.u32 2147483647, %v2441
    %vm2452 = vcmp.eq.f32.partialorder %v2451, 8.507059e+37
    %v2453 = vand.u32 %v2441, 2147483648
    %v2454 = vor.u32 1.1754944e-38, %v2453
    %v2455 = vsel %vm2452, %v2454, %v2450
    %v2456 = vmul.f32 %v2406, %v2455
    %v2457 = vmul.f32 %v2408, %v2455
    %v2458 = vmul.f32 %v2410, %v2455
    %v2459 = vmul.f32 %v2412, %v2455
    %v2460 = vmul.f32 %v2414, %v2455
    %v2461 = vmul.f32 %v2416, %v2455
    %v2462 = vmul.f32 %v2418, %v2455
    %v2463 = vmul.f32 %v2420, %v2455
    %v2464 = vmul.f32 %v2456, %v2124
    %v2465 = vmul.f32 %v2457, %v2125
    %v2466 = vmul.f32 %v2458, %v2126
    %v2467 = vmul.f32 %v2459, %v2127
    %v2468 = vmul.f32 %v2460, %v2128
    %v2469 = vmul.f32 %v2461, %v2129
    %v2470 = vmul.f32 %v2462, %v2130
    %v2471 = vmul.f32 %v2463, %v2131
    %v2472 = vadd.f32 %v2368, %v2464
    %v2473 = vadd.f32 %v2369, %v2465
    %v2474 = vadd.f32 %v2370, %v2466
    %v2475 = vadd.f32 %v2371, %v2467
    %v2476 = vadd.f32 %v2372, %v2468
    %v2477 = vadd.f32 %v2373, %v2469
    %v2478 = vadd.f32 %v2374, %v2470
    %v2479 = vadd.f32 %v2375, %v2471
    %2480 = vrot.lane.b32.xlu0 %v2124, 32
    %v2481 = vpop.permute.xlu0 %2480
    %2482 = vrot.lane.b32.xlu0 %v2125, 32
    %v2483 = vpop.permute.xlu0 %2482
    %2484 = vrot.lane.b32.xlu0 %v2126, 32
    %v2485 = vpop.permute.xlu0 %2484
    %2486 = vrot.lane.b32.xlu0 %v2127, 32
    %v2487 = vpop.permute.xlu0 %2486
    %2488 = vrot.lane.b32.xlu0 %v2128, 32
    %v2489 = vpop.permute.xlu0 %2488
    %2490 = vrot.lane.b32.xlu0 %v2129, 32
    %v2491 = vpop.permute.xlu0 %2490
    %2492 = vrot.lane.b32.xlu0 %v2130, 32
    %v2493 = vpop.permute.xlu0 %2492
    %2494 = vrot.lane.b32.xlu0 %v2131, 32
    %v2495 = vpop.permute.xlu0 %2494
    %2512 = vrot.lane.b32.xlu0 %v2472, 64
    %v2513 = vpop.permute.xlu0 %2512
    %2514 = vrot.lane.b32.xlu0 %v2473, 64
    %v2515 = vpop.permute.xlu0 %2514
    %2516 = vrot.lane.b32.xlu0 %v2474, 64
    %v2517 = vpop.permute.xlu0 %2516
    %2518 = vrot.lane.b32.xlu0 %v2475, 64
    %v2519 = vpop.permute.xlu0 %2518
    %2520 = vrot.lane.b32.xlu0 %v2476, 64
    %v2521 = vpop.permute.xlu0 %2520
    %2522 = vrot.lane.b32.xlu0 %v2477, 64
    %v2523 = vpop.permute.xlu0 %2522
    %2524 = vrot.lane.b32.xlu0 %v2478, 64
    %v2525 = vpop.permute.xlu0 %2524
    %2526 = vrot.lane.b32.xlu0 %v2479, 64
    %v2527 = vpop.permute.xlu0 %2526
    %2536 = vrot.lane.b32.xlu0 %v118, 96
    %v2537 = vpop.permute.xlu0 %2536
    %2538 = vrot.lane.b32.xlu0 %v121, 96
    %v2539 = vpop.permute.xlu0 %2538
    %2540 = vrot.lane.b32.xlu0 %v124, 96
    %v2541 = vpop.permute.xlu0 %2540
    %2542 = vrot.lane.b32.xlu0 %v127, 96
    %v2543 = vpop.permute.xlu0 %2542
    %2544 = vrot.lane.b32.xlu0 %v130, 96
    %v2545 = vpop.permute.xlu0 %2544
    %2546 = vrot.lane.b32.xlu0 %v133, 96
    %v2547 = vpop.permute.xlu0 %2546
    %2548 = vrot.lane.b32.xlu0 %v136, 96
    %v2549 = vpop.permute.xlu0 %2548
    %2550 = vrot.lane.b32.xlu0 %v139, 96
    %v2551 = vpop.permute.xlu0 %2550
    %v2560 = vsel %vm157, %v149, %v2481
    %v2561 = vsel %vm157, %v150, %v2483
    %v2562 = vsel %vm157, %v151, %v2485
    %v2563 = vsel %vm157, %v152, %v2487
    %v2564 = vsel %vm157, %v153, %v2489
    %v2565 = vsel %vm157, %v154, %v2491
    %v2566 = vsel %vm157, %v155, %v2493
    %v2567 = vsel %vm157, %v156, %v2495
    %v2568 = vsel %vm34, %v2560, %v2513
    %v2569 = vsel %vm34, %v2561, %v2515
    %v2570 = vsel %vm34, %v2562, %v2517
    %v2571 = vsel %vm34, %v2563, %v2519
    %v2572 = vsel %vm34, %v2564, %v2521
    %v2573 = vsel %vm34, %v2565, %v2523
    %v2574 = vsel %vm34, %v2566, %v2525
    %v2575 = vsel %vm34, %v2567, %v2527
    %vm2576 = vcmask 785408
    %v2577 = vsel %vm2576, %v2568, %v2537
    %v2578 = vsel %vm2576, %v2569, %v2539
    %v2579 = vsel %vm2576, %v2570, %v2541
    %v2580 = vsel %vm2576, %v2571, %v2543
    %v2581 = vsel %vm2576, %v2572, %v2545
    %v2582 = vsel %vm2576, %v2573, %v2547
    %v2583 = vsel %vm2576, %v2574, %v2549
    %v2584 = vsel %vm2576, %v2575, %v2551
    %2585 = vst [vmem:[#allocation2] sm:$0xff] %v2577
    %2586 = vst [vmem:[#allocation2 + $0x8] sm:$0xff] %v2578
    %2587 = vst [vmem:[#allocation2 + $0x10] sm:$0xff] %v2579
    %2588 = vst [vmem:[#allocation2 + $0x18] sm:$0xff] %v2580
    %2589 = vst [vmem:[#allocation2 + $0x20] sm:$0xff] %v2581
    %2590 = vst [vmem:[#allocation2 + $0x28] sm:$0xff] %v2582
    %2591 = vst [vmem:[#allocation2 + $0x30] sm:$0xff] %v2583
    %2592 = vst [vmem:[#allocation2 + $0x38] sm:$0xff] %v2584
    // Predicated region
    $region18: #{tpu_custom_call.1} parent=1 // pred_check
      _
    $region19: #{tpu_custom_call.1} parent=1 // pred_check_branch
      %2594 = sbr.rel (0) target = $region21
    $region20: #{tpu_custom_call.1} parent=1 // pred_region
      %2596 = vsyncadd [#allocation3], 0
      %s2597 = sshll.u32 [#allocation2], 4
      %s2598 = int_to_ptr.vmem [resolvable:$true] %s2597
      %s2599 = sshll.u32 %s4, 4
      %s2600 = int_to_ptr.hbm [resolvable:$true] %s2599
      %2605 = dma.vmem_to_hbm [thread:$0]  %s2598, 1024, %s2600, [#allocation3], 128, 128, 8
    $region21: #{tpu_custom_call.1} parent=1 // pred_fallthru
      _
    // Predicated region
    $region22: #{tpu_custom_call.1} parent=1 // pred_check
      _
    $region23: #{tpu_custom_call.1} parent=1 // pred_check_branch
      %2607 = sbr.rel (0) target = $region25
    $region24: #{tpu_custom_call.1} parent=1 // pred_region
      %2609 = dma.done [#allocation3], 1024
    $region25: #{tpu_custom_call.1} parent=1 // pred_fallthru
      _
    %2610 = vsyncpa [#allocation3], 1

</llo_original>
